<compile_context>
chip_gen: v7x
topology: tpu7x:2x2x1
jax: 0.10.0
libtpu: 0.0.40
codegen_flags: <defaults>
</compile_context>

<pallas_src>
import jax
import jax.numpy as jnp
from jax.experimental import pallas as pl
from jax.experimental.pallas import tpu as pltpu

LANE = 128


# ----------------------------- Pallas kernel --------------------------------
def decoder_kernel(tok_ref,                                    # SMEM [T, B] int32 (scalar prefetch)
                   emb_tab_ref, h0_ref, enc_ref,               # f32 [O,E], f32 [B,D], bf16 [B,S,He]
                   w_attn_ref, w_gru_ref, w_fc_ref, bias_ref,  # bf16, bf16, bf16, f32 [16,128]
                   logits_ref, hout_ref,                       # f32 [1,B,O_pad], f32 [B,D]
                   h_scr):                                      # VMEM scratch f32 [B,D]
    f32, bf16 = jnp.float32, jnp.bfloat16
    t = pl.program_id(0)

    B, S, He = enc_ref.shape
    D = h0_ref.shape[1]
    E = emb_tab_ref.shape[1]

    # hidden-state carry lives in VMEM scratch across grid steps
    @pl.when(t == 0)
    def _init():
        h_scr[...] = h0_ref[...]

    h = h_scr[...]                                             # [B, D] f32
    enc = enc_ref[...]                                         # [B, S, He] bf16

    # ---- in-kernel embedding gather (SMEM token ids -> dynamic table rows) ----
    emb = jnp.concatenate(
        [emb_tab_ref[pl.ds(tok_ref[t, b], 1), :] for b in range(B)], axis=0)   # [B, E] f32
    emb_b = emb.astype(bf16)
    h_b = h.astype(bf16)

    # ---- Bahdanau attention: softmax_S( v . tanh(h@Wah + enc@Wae + b) ) ----
    e_h = jnp.dot(h_b, w_attn_ref[:D, :], preferred_element_type=f32)           # [B, D]
    e_e = jnp.dot(enc.reshape(B * S, He), w_attn_ref[D:D + He, :],
                  preferred_element_type=f32).reshape(B, S, D)                  # [B, S, D]
    energy = jnp.tanh(e_e + e_h[:, None, :] + bias_ref[0:1, :D])                # [B, S, D]
    score = jnp.sum(energy * bias_ref[1:2, :D], axis=-1)                        # [B, S]

    # stabilized softmax over source positions; exact reciprocal (EUP, free here)
    score = score - jnp.max(score, axis=-1, keepdims=True)
    p = jnp.exp(score)
    a = p * pl.reciprocal(jnp.sum(p, axis=-1, keepdims=True), approx=False)     # [B, S]

    # context on the VPU/XLU instead of an M=1 MXU push
    context = jnp.sum(a[:, :, None] * enc.astype(f32), axis=1)                  # [B, He] f32
    ctx_b = context.astype(bf16)

    # ---- GRU single step, gates pre-split on the host (PyTorch order r, z, n) ----
    blk = E + He + D

    def gate(g):                    # g is a static Python int
        base = g * blk
        gi = (jnp.dot(emb_b, w_gru_ref[base:base + E, :], preferred_element_type=f32)
              + jnp.dot(ctx_b, w_gru_ref[base + E:base + E + He, :], preferred_element_type=f32)
              + bias_ref[3 + g:4 + g, :D])
        gh = (jnp.dot(h_b, w_gru_ref[base + E + He:base + blk, :], preferred_element_type=f32)
              + bias_ref[6 + g:7 + g, :D])
        return gi, gh

    gi_r, gh_r = gate(0)
    gi_z, gh_z = gate(1)
    gi_n, gh_n = gate(2)
    r = jax.nn.sigmoid(gi_r + gh_r)
    z = jax.nn.sigmoid(gi_z + gh_z)
    n = jnp.tanh(gi_n + r * gh_n)
    h_new = (1.0 - z) * n + z * h                                                # [B, D] f32

    # ---- output projection fc([h_new ; context ; emb]) with pre-split,
    # pre-transposed, O-padded (lane-dense) weights
    logits = (jnp.dot(h_new.astype(bf16), w_fc_ref[:D, :], preferred_element_type=f32)
              + jnp.dot(ctx_b, w_fc_ref[D:D + He, :], preferred_element_type=f32)
              + jnp.dot(emb_b, w_fc_ref[D + He:D + He + E, :], preferred_element_type=f32)
              + bias_ref[2:3, :])                                                # [B, O_pad]

    logits_ref[0, :, :] = logits
    h_scr[...] = h_new

    @pl.when(t == pl.num_programs(0) - 1)
    def _store_hidden():
        hout_ref[...] = h_new


# ------------------------- one-time param preparation -------------------------
def prepare_decoder_params(p, wdtype=jnp.bfloat16):
    """Split / transpose / pack / pad PyTorch-layout params into kernel-ready arrays."""
    E = p["embedding"].shape[1]
    D = p["w_hh"].shape[1]
    He = p["w_attn_e"].shape[1]
    O = p["w_fc"].shape[0]
    O_pad = int(pl.cdiv(O, LANE) * LANE)

    # attention weight: [D + He, D] = [Wah^T ; Wae^T]
    w_attn = jnp.concatenate([p["w_attn_h"].T, p["w_attn_e"].T], axis=0)

    # GRU weights, one [E+He+D, D] block per gate (r, z, n):
    #   rows = [W_ih_emb^T ; W_ih_ctx^T ; W_hh^T]   (GRU input is [emb | context])
    gate_blocks = []
    for g in range(3):
        wi = p["w_ih"][g * D:(g + 1) * D]            # [D, E+He]
        wh = p["w_hh"][g * D:(g + 1) * D]            # [D, D]
        gate_blocks.append(jnp.concatenate([wi[:, :E].T, wi[:, E:].T, wh.T], axis=0))
    w_gru = jnp.concatenate(gate_blocks, axis=0)     # [3*(E+He+D), D]

    # fc weight: [D+He+E, O_pad], pre-transposed, zero-padded to a lane multiple
    w_fc = jnp.pad(p["w_fc"].T, ((0, 0), (0, O_pad - O)))

    # every bias-like vector packed into one f32 [16, 128] block (all rows start at lane 0)
    bias = jnp.zeros((16, LANE), jnp.float32)
    bias = bias.at[0, :D].set(p["b_attn"])
    bias = bias.at[1, :D].set(p["v_attn"])
    bias = bias.at[2, :O].set(p["b_fc"])
    for g in range(3):
        bias = bias.at[3 + g, :D].set(p["b_ih"][g * D:(g + 1) * D])
        bias = bias.at[6 + g, :D].set(p["b_hh"][g * D:(g + 1) * D])

    return {
        "emb_table": p["embedding"].astype(jnp.float32),   # tiny; f32 keeps the dynamic-row gather simple
        "w_attn": w_attn.astype(wdtype),
        "w_gru": w_gru.astype(wdtype),
        "w_fc": w_fc.astype(wdtype),
        "bias": bias,
        "dims": {"E": E, "D": D, "He": He, "O": O, "O_pad": O_pad},
    }


# ------------------------------ JAX wrappers ----------------------------------
def decoder_decode_fused(token_seq, hidden, encoder_outputs, kp):
    """Run T teacher-forced decode steps in ONE pallas_call (grid=(T,)).

    token_seq: [T, B] int32, hidden: [B, D] f32, encoder_outputs: [B, S, He] f32.
    Returns (logits [T, B, O] f32, final hidden [B, D] f32).
    """
    T, B = token_seq.shape
    d = kp["dims"]
    E, D, He, O, O_pad = d["E"], d["D"], d["He"], d["O"], d["O_pad"]
    S = encoder_outputs.shape[1]

    enc = encoder_outputs.astype(kp["w_attn"].dtype)     # bf16: halves HBM->VMEM bytes
    hidden = hidden.astype(jnp.float32)

    const2 = lambda t, tok: (0, 0)
    const3 = lambda t, tok: (0, 0, 0)

    grid_spec = pltpu.PrefetchScalarGridSpec(
        num_scalar_prefetch=1,                 # token ids -> SMEM, visible to index_maps + kernel
        grid=(T,),
        in_specs=[
            pl.BlockSpec(kp["emb_table"].shape, const2),   # fetched once, VMEM-resident
            pl.BlockSpec((B, D), const2),
            pl.BlockSpec((B, S, He), const3),
            pl.BlockSpec(kp["w_attn"].shape, const2),
            pl.BlockSpec(kp["w_gru"].shape, const2),
            pl.BlockSpec(kp["w_fc"].shape, const2),
            pl.BlockSpec(kp["bias"].shape, const2),
        ],
        out_specs=(
            pl.BlockSpec((1, B, O_pad), lambda t, tok: (t, 0, 0)),   # per-step lane-dense logits
            pl.BlockSpec((B, D), const2),                            # final hidden (written at t==T-1)
        ),
        scratch_shapes=[pltpu.VMEM((B, D), jnp.float32)],            # hidden-state carry
    )

    per_step_flops = 2 * B * (
        D * D + S * He * D                      # attention energy matmuls
        + 2 * S * D + S * He                    # score + context (VPU)
        + 3 * (E * D + He * D + D * D)          # GRU gates
        + (D + He + E) * O_pad)                 # output projection
    param_bytes = sum(int(a.size) * a.dtype.itemsize
                      for a in (kp["emb_table"], kp["w_attn"], kp["w_gru"],
                                kp["w_fc"], kp["bias"]))
    io_bytes = int(token_seq.size) * 4 + int(hidden.size) * 4 \
        + int(enc.size) * enc.dtype.itemsize + T * B * O_pad * 4 + B * D * 4
    cost = pl.CostEstimate(flops=int(T * per_step_flops),
                           transcendentals=int(T * B * (S * D + S + 3 * D)),
                           bytes_accessed=int(param_bytes + io_bytes))

    logits_pad, h_final = pl.pallas_call(
        decoder_kernel,
        grid_spec=grid_spec,
        out_shape=(jax.ShapeDtypeStruct((T, B, O_pad), jnp.float32),
                   jax.ShapeDtypeStruct((B, D), jnp.float32)),
        compiler_params=pltpu.CompilerParams(dimension_semantics=("arbitrary",)),
        cost_estimate=cost,
    )(token_seq, kp["emb_table"], hidden, enc,
      kp["w_attn"], kp["w_gru"], kp["w_fc"], kp["bias"])

    return logits_pad[..., :O], h_final


def decoder_forward(tokens, hidden, encoder_outputs, kp):
    """One decode step (== Decoder.forward): the fused kernel with T = 1."""
    logits, h_new = decoder_decode_fused(tokens[None, :], hidden, encoder_outputs, kp)
    return logits[0], h_new


# ------------------------- pure-JAX reference (check) -------------------------
def decoder_reference(tokens, hidden, encoder_outputs, params):
    emb = jnp.take(params["embedding"], tokens, axis=0)
    D = hidden.shape[-1]
    e_h = hidden @ params["w_attn_h"].T
    e_e = jnp.einsum("bse,de->bsd", encoder_outputs, params["w_attn_e"])
    energy = jnp.tanh(e_e + e_h[:, None, :] + params["b_attn"])
    score = jnp.einsum("bsd,d->bs", energy, params["v_attn"])
    a = jax.nn.softmax(score, axis=1)
    context = jnp.einsum("bs,bse->be", a, encoder_outputs)
    x = jnp.concatenate([emb, context], axis=-1)
    gi = x @ params["w_ih"].T + params["b_ih"]
    gh = hidden @ params["w_hh"].T + params["b_hh"]
    r = jax.nn.sigmoid(gi[:, :D] + gh[:, :D])
    z = jax.nn.sigmoid(gi[:, D:2 * D] + gh[:, D:2 * D])
    n = jnp.tanh(gi[:, 2 * D:] + r * gh[:, 2 * D:])
    h_new = (1.0 - z) * n + z * hidden
    logits = jnp.concatenate([h_new, context, emb], axis=-1) @ params["w_fc"].T \
             + params["b_fc"]
    return logits, h_new


def decode_loop_reference(token_seq, hidden, encoder_outputs, params):
    logits_all, h = [], hidden
    for t in range(token_seq.shape[0]):
        lg, h = decoder_reference(token_seq[t], h, encoder_outputs, params)
        logits_all.append(lg)
    return jnp.stack(logits_all, axis=0), h


# ----------------------------------- main ------------------------------------
if __name__ == "__main__":
    OUTPUT_DIM = 24     # vocab size
    EMB_DIM    = 16
    ENC_HID    = 32
    DEC_HID    = 32
    BATCH      = 2
    SRC_LEN    = 8
    T_STEPS    = 6

    key = jax.random.PRNGKey(0)
    ks = jax.random.split(key, 16)

    def init(k, shape, scale=0.1):
        return (scale * jax.random.normal(k, shape)).astype(jnp.float32)

    params = {
        # nn.Embedding(output_dim, emb_dim)
        "embedding": init(ks[0], (OUTPUT_DIM, EMB_DIM)),
        # attention: Linear(enc_hid + dec_hid, dec_hid) split into [hidden | enc] halves
        "w_attn_h": init(ks[1], (DEC_HID, DEC_HID)),
        "w_attn_e": init(ks[2], (DEC_HID, ENC_HID)),
        "b_attn":   init(ks[3], (DEC_HID,)),
        "v_attn":   init(ks[4], (DEC_HID,)),
        # nn.GRU(enc_hid + emb, dec_hid): weight_ih_l0 [3D, E+He], weight_hh_l0 [3D, D]
        "w_ih": init(ks[5], (3 * DEC_HID, ENC_HID + EMB_DIM)),
        "w_hh": init(ks[6], (3 * DEC_HID, DEC_HID)),
        "b_ih": init(ks[7], (3 * DEC_HID,)),
        "b_hh": init(ks[8], (3 * DEC_HID,)),
        # nn.Linear(enc_hid + dec_hid + emb, output_dim)
        "w_fc": init(ks[9], (OUTPUT_DIM, ENC_HID + DEC_HID + EMB_DIM)),
        "b_fc": init(ks[10], (OUTPUT_DIM,)),
    }

    tokens = jax.random.randint(ks[11], (BATCH,), 0, OUTPUT_DIM, dtype=jnp.int32)
    hidden = init(ks[12], (BATCH, DEC_HID), scale=1.0)
    encoder_outputs = init(ks[13], (BATCH, SRC_LEN, ENC_HID), scale=1.0)
    token_seq = jax.random.randint(ks[14], (T_STEPS, BATCH), 0, OUTPUT_DIM, dtype=jnp.int32)

    kparams = prepare_decoder_params(params)   # one-time weight split/transpose/pack/pad (bf16)

    # tolerance accounts for bf16 weights/activations on the MXU (f32 accumulation)
    # versus the pure-f32 reference
    TOL = 2e-2

    # --- single step (== Decoder.forward semantics) ---
    logits, h_new = decoder_forward(tokens, hidden, encoder_outputs, kparams)
    jax.block_until_ready((logits, h_new))
    ref_logits, ref_h = decoder_reference(tokens, hidden, encoder_outputs, params)
    assert logits.shape == (BATCH, OUTPUT_DIM) and h_new.shape == (BATCH, DEC_HID)
    assert jnp.allclose(logits, ref_logits, atol=TOL, rtol=TOL)
    assert jnp.allclose(h_new, ref_h, atol=TOL, rtol=TOL)

    # --- fused T-step decode (single pallas_call, weights resident, hidden carried) ---
    logits_T, h_T = decoder_decode_fused(token_seq, hidden, encoder_outputs, kparams)
    jax.block_until_ready((logits_T, h_T))
    ref_logits_T, ref_h_T = decode_loop_reference(token_seq, hidden, encoder_outputs, params)
    assert logits_T.shape == (T_STEPS, BATCH, OUTPUT_DIM) and h_T.shape == (BATCH, DEC_HID)
    assert jnp.allclose(logits_T, ref_logits_T, atol=TOL, rtol=TOL)
    assert jnp.allclose(h_T, ref_h_T, atol=TOL, rtol=TOL)

    print("KERNEL_OK")
</pallas_src>

<mosaic_0001>
module attributes {stable_mosaic.version = 11 : i64} {
  func.func @decoder_kernel(%arg0: i32, %arg1: memref<1x2xi32, #tpu.memory_space<smem>>, %arg2: memref<24x16xf32, #tpu.memory_space<vmem>>, %arg3: memref<2x32xf32, #tpu.memory_space<vmem>>, %arg4: memref<2x8x32xbf16, #tpu.memory_space<vmem>>, %arg5: memref<64x32xbf16, #tpu.memory_space<vmem>>, %arg6: memref<240x32xbf16, #tpu.memory_space<vmem>>, %arg7: memref<80x128xbf16, #tpu.memory_space<vmem>>, %arg8: memref<16x128xf32, #tpu.memory_space<vmem>>, %arg9: memref<1x2x128xf32, #tpu.memory_space<vmem>>, %arg10: memref<2x32xf32, #tpu.memory_space<vmem>>, %arg11: memref<2x32xf32, #tpu.memory_space<vmem>>) attributes {dimension_semantics = [#tpu.dimension_semantics<arbitrary>], iteration_bounds = array<i64: 1>, scalar_prefetch = 1 : i64, scratch_operands = 1 : i64, tpu.core_type = #tpu.core_type<tc>, window_params = [{pipeline_mode = #tpu.pipeline_mode<synchronous>, transform_indices = @transform_0, window_bounds = array<i64: 24, 16>}, {pipeline_mode = #tpu.pipeline_mode<synchronous>, transform_indices = @transform_1, window_bounds = array<i64: 2, 32>}, {pipeline_mode = #tpu.pipeline_mode<synchronous>, transform_indices = @transform_2, window_bounds = array<i64: 2, 8, 32>}, {pipeline_mode = #tpu.pipeline_mode<synchronous>, transform_indices = @transform_3, window_bounds = array<i64: 64, 32>}, {pipeline_mode = #tpu.pipeline_mode<synchronous>, transform_indices = @transform_4, window_bounds = array<i64: 240, 32>}, {pipeline_mode = #tpu.pipeline_mode<synchronous>, transform_indices = @transform_5, window_bounds = array<i64: 80, 128>}, {pipeline_mode = #tpu.pipeline_mode<synchronous>, transform_indices = @transform_6, window_bounds = array<i64: 16, 128>}, {transform_indices = @transform_7, window_bounds = array<i64: 1, 2, 128>}, {pipeline_mode = #tpu.pipeline_mode<synchronous>, transform_indices = @transform_8, window_bounds = array<i64: 2, 32>}]} {
    %c0_i32 = arith.constant 0 : i32
    %0 = arith.cmpi eq, %arg0, %c0_i32 : i32
    %1 = arith.extui %0 : i1 to i32
    %c0_i32_0 = arith.constant 0 : i32
    %2 = arith.cmpi ne, %1, %c0_i32_0 : i32
    scf.if %2 {
      %c0_64 = arith.constant 0 : index
      %c0_65 = arith.constant 0 : index
      %129 = vector.load %arg3[%c0_64, %c0_65] : memref<2x32xf32, #tpu.memory_space<vmem>>, vector<2x32xf32>
      %c0_66 = arith.constant 0 : index
      %c0_67 = arith.constant 0 : index
      %130 = vector.load %arg11[%c0_66, %c0_67] : memref<2x32xf32, #tpu.memory_space<vmem>>, vector<2x32xf32>
      tpu.vector_store %arg11[%c0_66, %c0_67], %129 {strides = array<i32>} : memref<2x32xf32, #tpu.memory_space<vmem>>, vector<2x32xf32>,
    } else {
    }
    %c0 = arith.constant 0 : index
    %c0_1 = arith.constant 0 : index
    %3 = vector.load %arg11[%c0, %c0_1] : memref<2x32xf32, #tpu.memory_space<vmem>>, vector<2x32xf32>
    %c0_2 = arith.constant 0 : index
    %c0_3 = arith.constant 0 : index
    %c0_4 = arith.constant 0 : index
    %4 = vector.load %arg4[%c0_2, %c0_3, %c0_4] : memref<2x8x32xbf16, #tpu.memory_space<vmem>>, vector<2x8x32xbf16>
    %5 = arith.index_cast %arg0 : i32 to index
    %c0_5 = arith.constant 0 : index
    %6 = memref.load %arg1[%5, %c0_5] : memref<1x2xi32, #tpu.memory_space<smem>>
    %7 = arith.index_cast %6 : i32 to index
    %c0_6 = arith.constant 0 : index
    %8 = vector.load %arg2[%7, %c0_6] : memref<24x16xf32, #tpu.memory_space<vmem>>, vector<1x16xf32>
    %9 = arith.index_cast %arg0 : i32 to index
    %c1 = arith.constant 1 : index
    %10 = memref.load %arg1[%9, %c1] : memref<1x2xi32, #tpu.memory_space<smem>>
    %11 = arith.index_cast %10 : i32 to index
    %c0_7 = arith.constant 0 : index
    %12 = vector.load %arg2[%11, %c0_7] : memref<24x16xf32, #tpu.memory_space<vmem>>, vector<1x16xf32>
    %13 = tpu.concatenate %8, %12 in 0 : vector<1x16xf32>, vector<1x16xf32> -> vector<2x16xf32>
    %14 = arith.truncf %13 : vector<2x16xf32> to vector<2x16xbf16>
    %15 = arith.truncf %3 : vector<2x32xf32> to vector<2x32xbf16>
    %c0_8 = arith.constant 0 : index
    %c0_9 = arith.constant 0 : index
    %16 = vector.load %arg5[%c0_8, %c0_9] : memref<64x32xbf16, #tpu.memory_space<vmem>>, vector<32x32xbf16>
    %cst = arith.constant dense<0.000000e+00> : vector<2x32xf32>
    %17 = tpu.matmul %15, %16, %cst {dimension_numbers = #tpu.dot_dimension_numbers<[1], [0], [0], [1], [0, 0, 1, 1], [], []>} : vector<2x32xbf16>, vector<32x32xbf16>, vector<2x32xf32> -> vector<2x32xf32>
    %18 = vector.shape_cast %4 : vector<2x8x32xbf16> to vector<16x32xbf16>
    %c32 = arith.constant 32 : index
    %c0_10 = arith.constant 0 : index
    %19 = vector.load %arg5[%c32, %c0_10] : memref<64x32xbf16, #tpu.memory_space<vmem>>, vector<32x32xbf16>
    %cst_11 = arith.constant dense<0.000000e+00> : vector<16x32xf32>
    %20 = tpu.matmul %18, %19, %cst_11 {dimension_numbers = #tpu.dot_dimension_numbers<[1], [0], [0], [1], [0, 0, 1, 1], [], []>} : vector<16x32xbf16>, vector<32x32xbf16>, vector<16x32xf32> -> vector<16x32xf32>
    %21 = vector.shape_cast %20 : vector<16x32xf32> to vector<2x8x32xf32>
    %22 = vector.shape_cast %17 : vector<2x32xf32> to vector<2x1x32xf32>
    %23 = vector.broadcast %22 : vector<2x1x32xf32> to vector<2x8x32xf32>
    %24 = arith.addf %21, %23 : vector<2x8x32xf32>
    %c0_12 = arith.constant 0 : index
    %c0_13 = arith.constant 0 : index
    %25 = vector.load %arg8[%c0_12, %c0_13] : memref<16x128xf32, #tpu.memory_space<vmem>>, vector<1x32xf32>
    %26 = vector.shape_cast %25 : vector<1x32xf32> to vector<1x1x32xf32>
    %27 = vector.broadcast %26 : vector<1x1x32xf32> to vector<2x8x32xf32>
    %28 = arith.addf %24, %27 : vector<2x8x32xf32>
    %29 = math.tanh %28 : vector<2x8x32xf32>
    %c1_14 = arith.constant 1 : index
    %c0_15 = arith.constant 0 : index
    %30 = vector.load %arg8[%c1_14, %c0_15] : memref<16x128xf32, #tpu.memory_space<vmem>>, vector<1x32xf32>
    %31 = vector.shape_cast %30 : vector<1x32xf32> to vector<1x1x32xf32>
    %32 = vector.broadcast %31 : vector<1x1x32xf32> to vector<2x8x32xf32>
    %33 = arith.mulf %29, %32 : vector<2x8x32xf32>
    %cst_16 = arith.constant dense<0.000000e+00> : vector<2x8xf32>
    %34 = vector.multi_reduction <add>, %33, %cst_16 [2] : vector<2x8x32xf32> to vector<2x8xf32>
    %cst_17 = arith.constant dense<0xFF800000> : vector<2xf32>
    %35 = vector.multi_reduction <maximumf>, %34, %cst_17 [1] : vector<2x8xf32> to vector<2xf32>
    %36 = vector.shape_cast %35 : vector<2xf32> to vector<2x1xf32>
    %37 = vector.broadcast %36 : vector<2x1xf32> to vector<2x8xf32>
    %38 = arith.subf %34, %37 : vector<2x8xf32>
    %39 = math.exp %38 : vector<2x8xf32>
    %cst_18 = arith.constant dense<0.000000e+00> : vector<2xf32>
    %40 = vector.multi_reduction <add>, %39, %cst_18 [1] : vector<2x8xf32> to vector<2xf32>
    %41 = vector.shape_cast %40 : vector<2xf32> to vector<2x1xf32>
    %42 = tpu.reciprocal %41 : vector<2x1xf32> -> vector<2x1xf32>
    %43 = vector.broadcast %42 : vector<2x1xf32> to vector<2x8xf32>
    %44 = arith.mulf %39, %43 : vector<2x8xf32>
    %45 = vector.shape_cast %44 : vector<2x8xf32> to vector<2x8x1xf32>
    %46 = arith.extf %4 : vector<2x8x32xbf16> to vector<2x8x32xf32>
    %47 = vector.broadcast %45 : vector<2x8x1xf32> to vector<2x8x32xf32>
    %48 = arith.mulf %47, %46 : vector<2x8x32xf32>
    %cst_19 = arith.constant dense<0.000000e+00> : vector<2x32xf32>
    %49 = vector.multi_reduction <add>, %48, %cst_19 [1] : vector<2x8x32xf32> to vector<2x32xf32>
    %50 = arith.truncf %49 : vector<2x32xf32> to vector<2x32xbf16>
    %c0_20 = arith.constant 0 : index
    %c0_21 = arith.constant 0 : index
    %51 = vector.load %arg6[%c0_20, %c0_21] : memref<240x32xbf16, #tpu.memory_space<vmem>>, vector<16x32xbf16>
    %cst_22 = arith.constant dense<0.000000e+00> : vector<2x32xf32>
    %52 = tpu.matmul %14, %51, %cst_22 {dimension_numbers = #tpu.dot_dimension_numbers<[1], [0], [0], [1], [0, 0, 1, 1], [], []>} : vector<2x16xbf16>, vector<16x32xbf16>, vector<2x32xf32> -> vector<2x32xf32>
    %c16 = arith.constant 16 : index
    %c0_23 = arith.constant 0 : index
    %53 = vector.load %arg6[%c16, %c0_23] : memref<240x32xbf16, #tpu.memory_space<vmem>>, vector<32x32xbf16>
    %cst_24 = arith.constant dense<0.000000e+00> : vector<2x32xf32>
    %54 = tpu.matmul %50, %53, %cst_24 {dimension_numbers = #tpu.dot_dimension_numbers<[1], [0], [0], [1], [0, 0, 1, 1], [], []>} : vector<2x32xbf16>, vector<32x32xbf16>, vector<2x32xf32> -> vector<2x32xf32>
    %55 = arith.addf %52, %54 : vector<2x32xf32>
    %c3 = arith.constant 3 : index
    %c0_25 = arith.constant 0 : index
    %56 = vector.load %arg8[%c3, %c0_25] : memref<16x128xf32, #tpu.memory_space<vmem>>, vector<1x32xf32>
    %57 = vector.broadcast %56 : vector<1x32xf32> to vector<2x32xf32>
    %58 = arith.addf %55, %57 : vector<2x32xf32>
    %c48 = arith.constant 48 : index
    %c0_26 = arith.constant 0 : index
    %59 = vector.load %arg6[%c48, %c0_26] : memref<240x32xbf16, #tpu.memory_space<vmem>>, vector<32x32xbf16>
    %cst_27 = arith.constant dense<0.000000e+00> : vector<2x32xf32>
    %60 = tpu.matmul %15, %59, %cst_27 {dimension_numbers = #tpu.dot_dimension_numbers<[1], [0], [0], [1], [0, 0, 1, 1], [], []>} : vector<2x32xbf16>, vector<32x32xbf16>, vector<2x32xf32> -> vector<2x32xf32>
    %c6 = arith.constant 6 : index
    %c0_28 = arith.constant 0 : index
    %61 = vector.load %arg8[%c6, %c0_28] : memref<16x128xf32, #tpu.memory_space<vmem>>, vector<1x32xf32>
    %62 = vector.broadcast %61 : vector<1x32xf32> to vector<2x32xf32>
    %63 = arith.addf %60, %62 : vector<2x32xf32>
    %c80 = arith.constant 80 : index
    %c0_29 = arith.constant 0 : index
    %64 = vector.load %arg6[%c80, %c0_29] : memref<240x32xbf16, #tpu.memory_space<vmem>>, vector<16x32xbf16>
    %cst_30 = arith.constant dense<0.000000e+00> : vector<2x32xf32>
    %65 = tpu.matmul %14, %64, %cst_30 {dimension_numbers = #tpu.dot_dimension_numbers<[1], [0], [0], [1], [0, 0, 1, 1], [], []>} : vector<2x16xbf16>, vector<16x32xbf16>, vector<2x32xf32> -> vector<2x32xf32>
    %c96 = arith.constant 96 : index
    %c0_31 = arith.constant 0 : index
    %66 = vector.load %arg6[%c96, %c0_31] : memref<240x32xbf16, #tpu.memory_space<vmem>>, vector<32x32xbf16>
    %cst_32 = arith.constant dense<0.000000e+00> : vector<2x32xf32>
    %67 = tpu.matmul %50, %66, %cst_32 {dimension_numbers = #tpu.dot_dimension_numbers<[1], [0], [0], [1], [0, 0, 1, 1], [], []>} : vector<2x32xbf16>, vector<32x32xbf16>, vector<2x32xf32> -> vector<2x32xf32>
    %68 = arith.addf %65, %67 : vector<2x32xf32>
    %c4 = arith.constant 4 : index
    %c0_33 = arith.constant 0 : index
    %69 = vector.load %arg8[%c4, %c0_33] : memref<16x128xf32, #tpu.memory_space<vmem>>, vector<1x32xf32>
    %70 = vector.broadcast %69 : vector<1x32xf32> to vector<2x32xf32>
    %71 = arith.addf %68, %70 : vector<2x32xf32>
    %c128 = arith.constant 128 : index
    %c0_34 = arith.constant 0 : index
    %72 = vector.load %arg6[%c128, %c0_34] : memref<240x32xbf16, #tpu.memory_space<vmem>>, vector<32x32xbf16>
    %cst_35 = arith.constant dense<0.000000e+00> : vector<2x32xf32>
    %73 = tpu.matmul %15, %72, %cst_35 {dimension_numbers = #tpu.dot_dimension_numbers<[1], [0], [0], [1], [0, 0, 1, 1], [], []>} : vector<2x32xbf16>, vector<32x32xbf16>, vector<2x32xf32> -> vector<2x32xf32>
    %c7 = arith.constant 7 : index
    %c0_36 = arith.constant 0 : index
    %74 = vector.load %arg8[%c7, %c0_36] : memref<16x128xf32, #tpu.memory_space<vmem>>, vector<1x32xf32>
    %75 = vector.broadcast %74 : vector<1x32xf32> to vector<2x32xf32>
    %76 = arith.addf %73, %75 : vector<2x32xf32>
    %c160 = arith.constant 160 : index
    %c0_37 = arith.constant 0 : index
    %77 = vector.load %arg6[%c160, %c0_37] : memref<240x32xbf16, #tpu.memory_space<vmem>>, vector<16x32xbf16>
    %cst_38 = arith.constant dense<0.000000e+00> : vector<2x32xf32>
    %78 = tpu.matmul %14, %77, %cst_38 {dimension_numbers = #tpu.dot_dimension_numbers<[1], [0], [0], [1], [0, 0, 1, 1], [], []>} : vector<2x16xbf16>, vector<16x32xbf16>, vector<2x32xf32> -> vector<2x32xf32>
    %c176 = arith.constant 176 : index
    %c0_39 = arith.constant 0 : index
    %79 = vector.load %arg6[%c176, %c0_39] : memref<240x32xbf16, #tpu.memory_space<vmem>>, vector<32x32xbf16>
    %cst_40 = arith.constant dense<0.000000e+00> : vector<2x32xf32>
    %80 = tpu.matmul %50, %79, %cst_40 {dimension_numbers = #tpu.dot_dimension_numbers<[1], [0], [0], [1], [0, 0, 1, 1], [], []>} : vector<2x32xbf16>, vector<32x32xbf16>, vector<2x32xf32> -> vector<2x32xf32>
    %81 = arith.addf %78, %80 : vector<2x32xf32>
    %c5 = arith.constant 5 : index
    %c0_41 = arith.constant 0 : index
    %82 = vector.load %arg8[%c5, %c0_41] : memref<16x128xf32, #tpu.memory_space<vmem>>, vector<1x32xf32>
    %83 = vector.broadcast %82 : vector<1x32xf32> to vector<2x32xf32>
    %84 = arith.addf %81, %83 : vector<2x32xf32>
    %c208 = arith.constant 208 : index
    %c0_42 = arith.constant 0 : index
    %85 = vector.load %arg6[%c208, %c0_42] : memref<240x32xbf16, #tpu.memory_space<vmem>>, vector<32x32xbf16>
    %cst_43 = arith.constant dense<0.000000e+00> : vector<2x32xf32>
    %86 = tpu.matmul %15, %85, %cst_43 {dimension_numbers = #tpu.dot_dimension_numbers<[1], [0], [0], [1], [0, 0, 1, 1], [], []>} : vector<2x32xbf16>, vector<32x32xbf16>, vector<2x32xf32> -> vector<2x32xf32>
    %c8 = arith.constant 8 : index
    %c0_44 = arith.constant 0 : index
    %87 = vector.load %arg8[%c8, %c0_44] : memref<16x128xf32, #tpu.memory_space<vmem>>, vector<1x32xf32>
    %88 = vector.broadcast %87 : vector<1x32xf32> to vector<2x32xf32>
    %89 = arith.addf %86, %88 : vector<2x32xf32>
    %90 = arith.addf %58, %63 : vector<2x32xf32>
    %91 = arith.negf %90 : vector<2x32xf32>
    %92 = math.exp %91 : vector<2x32xf32>
    %cst_45 = arith.constant 1.000000e+00 : f32
    %93 = vector.broadcast %cst_45 : f32 to vector<2x32xf32>
    %94 = arith.addf %93, %92 : vector<2x32xf32>
    %95 = arith.divf %93, %94 : vector<2x32xf32>
    %96 = arith.addf %71, %76 : vector<2x32xf32>
    %97 = arith.negf %96 : vector<2x32xf32>
    %98 = math.exp %97 : vector<2x32xf32>
    %cst_46 = arith.constant 1.000000e+00 : f32
    %99 = vector.broadcast %cst_46 : f32 to vector<2x32xf32>
    %100 = arith.addf %99, %98 : vector<2x32xf32>
    %101 = arith.divf %99, %100 : vector<2x32xf32>
    %102 = arith.mulf %95, %89 : vector<2x32xf32>
    %103 = arith.addf %84, %102 : vector<2x32xf32>
    %104 = math.tanh %103 : vector<2x32xf32>
    %cst_47 = arith.constant 1.000000e+00 : f32
    %105 = vector.broadcast %cst_47 : f32 to vector<2x32xf32>
    %106 = arith.subf %105, %101 : vector<2x32xf32>
    %107 = arith.mulf %106, %104 : vector<2x32xf32>
    %108 = arith.mulf %101, %3 : vector<2x32xf32>
    %109 = arith.addf %107, %108 : vector<2x32xf32>
    %110 = arith.truncf %109 : vector<2x32xf32> to vector<2x32xbf16>
    %c0_48 = arith.constant 0 : index
    %c0_49 = arith.constant 0 : index
    %111 = vector.load %arg7[%c0_48, %c0_49] : memref<80x128xbf16, #tpu.memory_space<vmem>>, vector<32x128xbf16>
    %cst_50 = arith.constant dense<0.000000e+00> : vector<2x128xf32>
    %112 = tpu.matmul %110, %111, %cst_50 {dimension_numbers = #tpu.dot_dimension_numbers<[1], [0], [0], [1], [0, 0, 1, 1], [], []>} : vector<2x32xbf16>, vector<32x128xbf16>, vector<2x128xf32> -> vector<2x128xf32>
    %c32_51 = arith.constant 32 : index
    %c0_52 = arith.constant 0 : index
    %113 = vector.load %arg7[%c32_51, %c0_52] : memref<80x128xbf16, #tpu.memory_space<vmem>>, vector<32x128xbf16>
    %cst_53 = arith.constant dense<0.000000e+00> : vector<2x128xf32>
    %114 = tpu.matmul %50, %113, %cst_53 {dimension_numbers = #tpu.dot_dimension_numbers<[1], [0], [0], [1], [0, 0, 1, 1], [], []>} : vector<2x32xbf16>, vector<32x128xbf16>, vector<2x128xf32> -> vector<2x128xf32>
    %115 = arith.addf %112, %114 : vector<2x128xf32>
    %c64 = arith.constant 64 : index
    %c0_54 = arith.constant 0 : index
    %116 = vector.load %arg7[%c64, %c0_54] : memref<80x128xbf16, #tpu.memory_space<vmem>>, vector<16x128xbf16>
    %cst_55 = arith.constant dense<0.000000e+00> : vector<2x128xf32>
    %117 = tpu.matmul %14, %116, %cst_55 {dimension_numbers = #tpu.dot_dimension_numbers<[1], [0], [0], [1], [0, 0, 1, 1], [], []>} : vector<2x16xbf16>, vector<16x128xbf16>, vector<2x128xf32> -> vector<2x128xf32>
    %118 = arith.addf %115, %117 : vector<2x128xf32>
    %c2 = arith.constant 2 : index
    %c0_56 = arith.constant 0 : index
    %119 = vector.load %arg8[%c2, %c0_56] : memref<16x128xf32, #tpu.memory_space<vmem>>, vector<1x128xf32>
    %120 = vector.broadcast %119 : vector<1x128xf32> to vector<2x128xf32>
    %121 = arith.addf %118, %120 : vector<2x128xf32>
    %c0_57 = arith.constant 0 : index
    %c0_58 = arith.constant 0 : index
    %c0_59 = arith.constant 0 : index
    %122 = vector.load %arg9[%c0_57, %c0_58, %c0_59] : memref<1x2x128xf32, #tpu.memory_space<vmem>>, vector<1x2x128xf32>
    %123 = vector.shape_cast %122 : vector<1x2x128xf32> to vector<2x128xf32>
    %124 = vector.shape_cast %121 : vector<2x128xf32> to vector<1x2x128xf32>
    tpu.vector_store %arg9[%c0_57, %c0_58, %c0_59], %124 {strides = array<i32>} : memref<1x2x128xf32, #tpu.memory_space<vmem>>, vector<1x2x128xf32>,
    %c0_60 = arith.constant 0 : index
    %c0_61 = arith.constant 0 : index
    %125 = vector.load %arg11[%c0_60, %c0_61] : memref<2x32xf32, #tpu.memory_space<vmem>>, vector<2x32xf32>
    tpu.vector_store %arg11[%c0_60, %c0_61], %109 {strides = array<i32>} : memref<2x32xf32, #tpu.memory_space<vmem>>, vector<2x32xf32>,
    %c0_i32_62 = arith.constant 0 : i32
    %126 = arith.cmpi eq, %arg0, %c0_i32_62 : i32
    %127 = arith.extui %126 : i1 to i32
    %c0_i32_63 = arith.constant 0 : i32
    %128 = arith.cmpi ne, %127, %c0_i32_63 : i32
    scf.if %128 {
      %c0_64 = arith.constant 0 : index
      %c0_65 = arith.constant 0 : index
      %129 = vector.load %arg10[%c0_64, %c0_65] : memref<2x32xf32, #tpu.memory_space<vmem>>, vector<2x32xf32>
      tpu.vector_store %arg10[%c0_64, %c0_65], %109 {strides = array<i32>} : memref<2x32xf32, #tpu.memory_space<vmem>>, vector<2x32xf32>,
    } else {
    }
    return
  }
  func.func @transform_0(%arg0: i32, %arg1: memref<1x2xi32, #tpu.memory_space<smem>>) -> (i32, i32) {
    %c0_i32 = arith.constant 0 : i32
    %c0_i32_0 = arith.constant 0 : i32
    %c0_i32_1 = arith.constant 0 : i32
    return %c0_i32, %c0_i32_0 : i32, i32
  }
  func.func @transform_1(%arg0: i32, %arg1: memref<1x2xi32, #tpu.memory_space<smem>>) -> (i32, i32) {
    %c0_i32 = arith.constant 0 : i32
    %c0_i32_0 = arith.constant 0 : i32
    %c0_i32_1 = arith.constant 0 : i32
    return %c0_i32, %c0_i32_0 : i32, i32
  }
  func.func @transform_2(%arg0: i32, %arg1: memref<1x2xi32, #tpu.memory_space<smem>>) -> (i32, i32, i32) {
    %c0_i32 = arith.constant 0 : i32
    %c0_i32_0 = arith.constant 0 : i32
    %c0_i32_1 = arith.constant 0 : i32
    %c0_i32_2 = arith.constant 0 : i32
    return %c0_i32, %c0_i32_0, %c0_i32_1 : i32, i32, i32
  }
  func.func @transform_3(%arg0: i32, %arg1: memref<1x2xi32, #tpu.memory_space<smem>>) -> (i32, i32) {
    %c0_i32 = arith.constant 0 : i32
    %c0_i32_0 = arith.constant 0 : i32
    %c0_i32_1 = arith.constant 0 : i32
    return %c0_i32, %c0_i32_0 : i32, i32
  }
  func.func @transform_4(%arg0: i32, %arg1: memref<1x2xi32, #tpu.memory_space<smem>>) -> (i32, i32) {
    %c0_i32 = arith.constant 0 : i32
    %c0_i32_0 = arith.constant 0 : i32
    %c0_i32_1 = arith.constant 0 : i32
    return %c0_i32, %c0_i32_0 : i32, i32
  }
  func.func @transform_5(%arg0: i32, %arg1: memref<1x2xi32, #tpu.memory_space<smem>>) -> (i32, i32) {
    %c0_i32 = arith.constant 0 : i32
    %c0_i32_0 = arith.constant 0 : i32
    %c0_i32_1 = arith.constant 0 : i32
    return %c0_i32, %c0_i32_0 : i32, i32
  }
  func.func @transform_6(%arg0: i32, %arg1: memref<1x2xi32, #tpu.memory_space<smem>>) -> (i32, i32) {
    %c0_i32 = arith.constant 0 : i32
    %c0_i32_0 = arith.constant 0 : i32
    %c0_i32_1 = arith.constant 0 : i32
    return %c0_i32, %c0_i32_0 : i32, i32
  }
  func.func @transform_7(%arg0: i32, %arg1: memref<1x2xi32, #tpu.memory_space<smem>>) -> (i32, i32, i32) {
    %c0_i32 = arith.constant 0 : i32
    %c0_i32_0 = arith.constant 0 : i32
    %c0_i32_1 = arith.constant 0 : i32
    return %arg0, %c0_i32, %c0_i32_0 : i32, i32, i32
  }
  func.func @transform_8(%arg0: i32, %arg1: memref<1x2xi32, #tpu.memory_space<smem>>) -> (i32, i32) {
    %c0_i32 = arith.constant 0 : i32
    %c0_i32_0 = arith.constant 0 : i32
    %c0_i32_1 = arith.constant 0 : i32
    return %c0_i32, %c0_i32_0 : i32, i32
  }
}

</mosaic_0001>

<llo_original>
// kernel: tpu_custom_call.1
$region0: #{tpu_custom_call.1}
  #allocation0 [shape = 'u32[]', space=smem, size = 0x4, offset = 0x4, fixed_abs, tag = 'smem constant byte address 0x4 - core index']
  #allocation1 [shape = 'u32[144,128]{1,0:T(1,128)}', space=vmem, size = 0x12000, scoped, tag = 'internal scratch']
  #allocation2 [shape = 'f32[2,32]{1,0:T(2,128)}', space=vmem, size = 0x400, scoped, tag = 'scratch operand']
  #allocation3 [shape = 's32[1]{0}', space=sflag, size = 0x4, scoped, tag = 'scoped memory for tpu_custom_call.1']
  #allocation4 [shape = 'u8[512]{0}', space=smem, size = 0x200, scoped, tag = 'prefetched SMEM operand 0']
  %s0 = inlined_call_operand.vmem [shape: s32[1,2], index: 0, kind: input, shape index: {}]
  %s1 = inlined_call_operand.vmem [shape: f32[24,16], index: 1, kind: input, shape index: {}]
  %s2 = inlined_call_operand.vmem [shape: f32[2,32], index: 2, kind: input, shape index: {}]
  %s3 = inlined_call_operand.vmem [shape: bf16[2,8,32], index: 3, kind: input, shape index: {}]
  %s4 = inlined_call_operand.vmem [shape: bf16[64,32], index: 4, kind: input, shape index: {}]
  %s5 = inlined_call_operand.vmem [shape: bf16[240,32], index: 5, kind: input, shape index: {}]
  %s6 = inlined_call_operand.vmem [shape: bf16[80,128], index: 6, kind: input, shape index: {}]
  %s7 = inlined_call_operand.vmem [shape: f32[16,128], index: 7, kind: input, shape index: {}]
  %s8 = inlined_call_operand.hbm [shape: f32[1,2,128], index: 8, kind: output, shape index: {0}]
  %s9 = inlined_call_operand.hbm [shape: f32[2,32], index: 9, kind: output, shape index: {1}]
  %10 = xla_tuple %s8, %s9
  %s11 = sld [smem:[#allocation0]]
  $region54: #{tpu_custom_call.1} parent=0
    _
  %s13 = ssub.s32 1, %s11
  %s14 = scalar_select 0, %s13, %s11
  %s15 = sshll.u32 %s0, 4
  %s16 = int_to_ptr.vmem [resolvable:$true] %s15
  %18 = dma.vmem_to_smem %s16, 16, [#allocation4], [#allocation3]
  %19 = dma.done [#allocation3], 16
  %20 = sfence
  $region1: #{tpu_custom_call.1} parent=0
    #allocation5 [shape = 'u8[1024]{0}', space=vmem, size = 0x400, scoped, tag = 'output window, operand 0, single buffered']
    #allocation6 [shape = 's32[1]{0}', space=sflag, size = 0x4, scoped, tag = 'scoped memory for tpu_custom_call.1']
    #allocation7 [shape = 'u8[1024]{0}', space=vmem, size = 0x400, scoped, tag = 'output window, operand 1, single buffered']
    #allocation8 [shape = 's32[1]{0}', space=sflag, size = 0x4, scoped, tag = 'scoped memory for tpu_custom_call.1']
    %21 = vsyncpa [#allocation6], 0
    %22 = vsyncpa [#allocation8], 0
    // Predicated region
    $region2: #{tpu_custom_call.1} parent=1 // pred_check
      _
    $region3: #{tpu_custom_call.1} parent=1 // pred_check_branch
      %24 = sbr.rel (0) target = $region5
    $region4: #{tpu_custom_call.1} parent=1 // pred_region
      _
    $region5: #{tpu_custom_call.1} parent=1 // pred_fallthru
      _
    // Predicated region
    $region6: #{tpu_custom_call.1} parent=1 // pred_check
      _
    $region7: #{tpu_custom_call.1} parent=1 // pred_check_branch
      %26 = sbr.rel (0) target = $region9
    $region8: #{tpu_custom_call.1} parent=1 // pred_region
      _
    $region9: #{tpu_custom_call.1} parent=1 // pred_fallthru
      _
    // Predicated region
    $region10: #{tpu_custom_call.1} parent=1 // pred_check
      _
    $region11: #{tpu_custom_call.1} parent=1 // pred_check_branch
      %28 = sbr.rel (0) target = $region13
    $region12: #{tpu_custom_call.1} parent=1 // pred_region
      _
    $region13: #{tpu_custom_call.1} parent=1 // pred_fallthru
      _
    // Predicated region
    $region14: #{tpu_custom_call.1} parent=1 // pred_check
      _
    $region15: #{tpu_custom_call.1} parent=1 // pred_check_branch
      %30 = sbr.rel (0) target = $region17
    $region16: #{tpu_custom_call.1} parent=1 // pred_region
      _
    $region17: #{tpu_custom_call.1} parent=1 // pred_fallthru
      _
    // Predicated region
    $region18: #{tpu_custom_call.1} parent=1 // pred_check
      _
    $region19: #{tpu_custom_call.1} parent=1 // pred_check_branch
      %32 = sbr.rel (0) target = $region21
    $region20: #{tpu_custom_call.1} parent=1 // pred_region
      _
    $region21: #{tpu_custom_call.1} parent=1 // pred_fallthru
      _
    // Predicated region
    $region22: #{tpu_custom_call.1} parent=1 // pred_check
      _
    $region23: #{tpu_custom_call.1} parent=1 // pred_check_branch
      %34 = sbr.rel (0) target = $region25
    $region24: #{tpu_custom_call.1} parent=1 // pred_region
      _
    $region25: #{tpu_custom_call.1} parent=1 // pred_fallthru
      _
    // Predicated region
    $region26: #{tpu_custom_call.1} parent=1 // pred_check
      _
    $region27: #{tpu_custom_call.1} parent=1 // pred_check_branch
      %36 = sbr.rel (0) target = $region29
    $region28: #{tpu_custom_call.1} parent=1 // pred_region
      _
    $region29: #{tpu_custom_call.1} parent=1 // pred_fallthru
      _
    %p38 = scmp.eq.s32.totalorder 0, 0
    // Predicated region
    $region30: #{tpu_custom_call.1} parent=1 // pred_check
      %p39 = pneg %p38
    $region31: #{tpu_custom_call.1} parent=1 // pred_check_branch
      %41 = sbr.rel (%p39) target = $region33
    $region32: #{tpu_custom_call.1} parent=1 // pred_region
      %v42 = vld [vmem:[%s2] sm:$0x3]
      %vm43 = vcmask 254976
      %44 = vst.msk [vmem:[#allocation2] sm:$0x3] %vm43, %v42
    $region33: #{tpu_custom_call.1} parent=1 // pred_fallthru
      _
    %v45 = vld [vmem:[#allocation2] sm:$0x3]
    %v46 = vld [vmem:[%s3] sm:$0xf]
    %v47 = vld [vmem:[%s3 + $0x4] sm:$0xf]
    %s48 = smul.u32 0, 128
    %s49 = sld [smem:[#allocation4 + %s48]]
    %s50 = scalar_lea.vmem %s1, %s49
    %v51 = vld [vmem:[%s50] sm:$0x1]
    %s52 = sadd.s32 %s48, 1
    %s53 = sld [smem:[#allocation4 + %s52]]
    %s54 = scalar_lea.vmem %s1, %s53
    %v55 = vld [vmem:[%s54] sm:$0x1]
    %v57 = vrot.slane %v55, 7
    %vm59 = vcmask 1040384
    %v60 = vsel %vm59, %v51, %v57
    %v61 = vpack.c.bf16 %v60, %v60
    %v62 = vpack.c.bf16 %v45, %v45
    %v63 = vld [vmem:[%s4] sm:$0xf]
    %v64 = vld [vmem:[%s4 + $0x4] sm:$0xf]
    %v65 = vld [vmem:[%s4 + $0x8] sm:$0xf]
    %v66 = vld [vmem:[%s4 + $0xc] sm:$0xf]
    %v71 = vunpack.c.l.b16 %v63
    %v72 = vunpack.c.l.b16 %v64
    %v73 = vunpack.c.l.b16 %v65
    %v74 = vunpack.c.l.b16 %v66
    %v75 = vpack.c.b16 %v72, %v71
    %v76 = vpack.c.b16 %v74, %v73
    %vm79 = vcmask 261120
    %v81 = vsel %vm79, %v62, 0
    %83 = vmatprep.subr.bf16.mxu0 0
    %84 = vmatpush1.bf16.msra.mxu0 %v75
    %85 = vmatprep.subr.bf16.mxu0 0
    %86 = vmatpush1.bf16.msra.mxu0 %v76
    %87 = vmatprep.subr.bf16.mxu0 0
    %88 = vmatpush1.bf16.msra.mxu0 0
    %89 = vmatprep.subr.bf16.mxu0 0
    %90 = vmatpush1.bf16.msra.mxu0 0
    %91 = vmatprep.subr.bf16.mxu0 0
    %92 = vmatpush1.bf16.msra.mxu0 0
    %93 = vmatprep.subr.bf16.mxu0 0
    %94 = vmatpush1.bf16.msra.mxu0 0
    %95 = vmatprep.subr.bf16.mxu0 0
    %96 = vmatpush1.bf16.msra.mxu0 0
    %97 = vmatprep.subr.bf16.mxu0 0
    %98 = vmatpush1.bf16.msra.mxu0 0
    %99 = vmatprep.subr.bf16.mxu0 0
    %100 = vmatpush1.bf16.msra.mxu0 0
    %101 = vmatprep.subr.bf16.mxu0 0
    %102 = vmatpush1.bf16.msra.mxu0 0
    %103 = vmatprep.subr.bf16.mxu0 0
    %104 = vmatpush1.bf16.msra.mxu0 0
    %105 = vmatprep.subr.bf16.mxu0 0
    %106 = vmatpush1.bf16.msra.mxu0 0
    %107 = vmatprep.subr.bf16.mxu0 0
    %108 = vmatpush1.bf16.msra.mxu0 0
    %109 = vmatprep.subr.bf16.mxu0 0
    %110 = vmatpush1.bf16.msra.mxu0 0
    %111 = vmatprep.subr.bf16.mxu0 0
    %112 = vmatpush1.bf16.msra.mxu0 0
    %113 = vmatprep.subr.bf16.mxu0 0
    %114 = vmatpush1.bf16.msra.mxu0 0
    %115 = vmatprep.mubr.bf16.mxu0 0
    %116 = vmatmul.mubr.bf16.gmra.mrb[0].mxu0 %v81
    %v117 = vpop.f32.mrb[0].mxu0
    %v118 = vadd.f32 0.0, %v117
    %v119 = vpop.f32.mrb[0].mxu0
    %v120 = vpop.f32.mrb[0].mxu0
    %v121 = vpop.f32.mrb[0].mxu0
    %122 = vdwg.mxu0
    %v123 = vld [vmem:[%s4 + $0x10] sm:$0xf]
    %v124 = vld [vmem:[%s4 + $0x14] sm:$0xf]
    %v125 = vld [vmem:[%s4 + $0x18] sm:$0xf]
    %v126 = vld [vmem:[%s4 + $0x1c] sm:$0xf]
    %v129 = vunpack.c.l.b16 %v46
    %v130 = vunpack.c.l.b16 %v47
    %v131 = vpack.c.b16 %v130, %v129
    %v136 = vunpack.c.l.b16 %v123
    %v137 = vunpack.c.l.b16 %v124
    %v138 = vunpack.c.l.b16 %v125
    %v139 = vunpack.c.l.b16 %v126
    %v140 = vpack.c.b16 %v137, %v136
    %v141 = vpack.c.b16 %v139, %v138
    %v145 = vsel %vm79, %v131, 0
    %147 = vmatprep.subr.bf16.mxu0 0
    %148 = vmatpush1.bf16.msra.mxu0 %v140
    %149 = vmatprep.subr.bf16.mxu0 0
    %150 = vmatpush1.bf16.msra.mxu0 %v141
    %151 = vmatprep.subr.bf16.mxu0 0
    %152 = vmatpush1.bf16.msra.mxu0 0
    %153 = vmatprep.subr.bf16.mxu0 0
    %154 = vmatpush1.bf16.msra.mxu0 0
    %155 = vmatprep.subr.bf16.mxu0 0
    %156 = vmatpush1.bf16.msra.mxu0 0
    %157 = vmatprep.subr.bf16.mxu0 0
    %158 = vmatpush1.bf16.msra.mxu0 0
    %159 = vmatprep.subr.bf16.mxu0 0
    %160 = vmatpush1.bf16.msra.mxu0 0
    %161 = vmatprep.subr.bf16.mxu0 0
    %162 = vmatpush1.bf16.msra.mxu0 0
    %163 = vmatprep.subr.bf16.mxu0 0
    %164 = vmatpush1.bf16.msra.mxu0 0
    %165 = vmatprep.subr.bf16.mxu0 0
    %166 = vmatpush1.bf16.msra.mxu0 0
    %167 = vmatprep.subr.bf16.mxu0 0
    %168 = vmatpush1.bf16.msra.mxu0 0
    %169 = vmatprep.subr.bf16.mxu0 0
    %170 = vmatpush1.bf16.msra.mxu0 0
    %171 = vmatprep.subr.bf16.mxu0 0
    %172 = vmatpush1.bf16.msra.mxu0 0
    %173 = vmatprep.subr.bf16.mxu0 0
    %174 = vmatpush1.bf16.msra.mxu0 0
    %175 = vmatprep.subr.bf16.mxu0 0
    %176 = vmatpush1.bf16.msra.mxu0 0
    %177 = vmatprep.subr.bf16.mxu0 0
    %178 = vmatpush1.bf16.msra.mxu0 0
    %179 = vmatprep.mubr.bf16.mxu0 0
    %180 = vmatmul.mubr.bf16.gmra.mrb[0].mxu0 %v145
    %v181 = vpop.f32.mrb[0].mxu0
    %v182 = vadd.f32 0.0, %v181
    %v183 = vpop.f32.mrb[0].mxu0
    %v184 = vpop.f32.mrb[0].mxu0
    %v185 = vadd.f32 0.0, %v184
    %v186 = vpop.f32.mrb[0].mxu0
    %187 = vdwg.mxu0
    %v190 = vunpack.c.l.s4 1966171168
    %v191 = vunpack.c.0.s8 %v190
    %v192 = vlaneseq
    %v193 = vshrl.u32 %v192, 7
    %v194 = vsub.s32 %v191, %v193
    %v195 = vrot.slane %v118, %v194
    %v196 = vcombine.high %v195, %v195
    %v198 = vunpack.c.l.s4 1966171168
    %v199 = vunpack.c.0.s8 %v198
    %v200 = vlaneseq
    %v201 = vshrl.u32 %v200, 7
    %v202 = vsub.s32 %v199, %v201
    %v203 = vrot.slane %v195, %v202
    %v205 = vunpack.c.l.s4 1966171168
    %v206 = vunpack.c.0.s8 %v205
    %v207 = vlaneseq
    %v208 = vshrl.u32 %v207, 7
    %v209 = vsub.s32 %v206, %v208
    %v210 = vrot.slane %v196, %v209
    %v211 = vlaneseq
    %v212 = vshrl.u32 %v211, 7
    %v213 = vsub.s32 0, %v212
    %v214 = vrot.slane %v203, %v213
    %v215 = vlaneseq
    %v216 = vshrl.u32 %v215, 7
    %v217 = vsub.s32 0, %v216
    %v218 = vrot.slane %v210, %v217
    %v221 = vadd.f32 %v182, %v214
    %v222 = vadd.f32 %v185, %v218
    %v223 = vld [vmem:[%s7] sm:$0x1]
    %v224 = vlaneseq
    %v225 = vshrl.u32 %v224, 7
    %v226 = vsub.s32 0, %v225
    %v227 = vrot.slane %v223, %v226
    %v228 = vadd.f32 %v221, %v227
    %v229 = vadd.f32 %v222, %v227
    %v230 = vtanh.pop %v228
    %v231 = vtanh.pop %v229
    %v232 = vld [vmem:[%s7 + $0x1] sm:$0x1]
    %v233 = vlaneseq
    %v234 = vshrl.u32 %v233, 7
    %v235 = vsub.s32 0, %v234
    %v236 = vrot.slane %v232, %v235
    %v237 = vmul.f32 %v230, %v236
    %v238 = vmul.f32 %v231, %v236
    %v239 = vsel %vm79, %v237, 0.0
    %240 = vadd.xlane.f32.xlu0 %v239
    %v241 = vpop.xlane.xlu0 %240
    %v242 = vsel %vm79, %v238, 0.0
    %243 = vadd.xlane.f32.xlu0 %v242
    %v244 = vpop.xlane.xlu0 %243
    %v247 = vlaneseq
    %v248 = vand.u32 %v247, 127
    %v249 = vlaneseq
    %v250 = vshrl.u32 %v249, 7
    %v251 = vsub.s32 %v248, %v250
    %v252 = vrot.slane %v241, %v251
    %v253 = vlaneseq
    %v254 = vshrl.u32 %v253, 7
    %v255 = vsub.s32 %v248, %v254
    %v256 = vrot.slane %v244, %v255
    %vm257 = vcmask 1041409
    %v258 = vsel %vm257, %v256, %v252
    %vm260 = vcmask 58368
    %v261 = vsel %vm260, %v258, -inf
    %262 = vmax.xlane.f32.xlu0 %v261
    %v263 = vpop.xlane.xlu0 %262
    %v265 = vlaneseq
    %v266 = vshrl.u32 %v265, 7
    %v267 = vsub.s32 0, %v266
    %v268 = vrot.slane %v263, %v267
    %v269 = vlaneseq
    %v270 = vshrl.u32 %v269, 7
    %v271 = vsub.s32 1, %v270
    %v272 = vrot.slane %v263, %v271
    %v275 = vsub.f32 %v241, %v268
    %v276 = vsub.f32 %v244, %v272
    %v277 = vmul.f32 %v275, 1.442695
    %v278 = vpow.pop %v277
    %v279 = vmul.f32 %v276, 1.442695
    %v280 = vpow.pop %v279
    %283 = vset.pattern.permute.xlu0 0
    %284 = vperm.xlu0 %283, %v278
    %v285 = vpop.permute.xlu0 %284
    %286 = vset.pattern.permute.xlu0 0
    %287 = vperm.xlu0 %286, %v280
    %v288 = vpop.permute.xlu0 %287
    %v289 = vlaneseq
    %v290 = vshrl.u32 %v289, 7
    %v291 = vsub.s32 %v248, %v290
    %v292 = vrot.slane %v285, %v291
    %v293 = vlaneseq
    %v294 = vshrl.u32 %v293, 7
    %v295 = vsub.s32 %v248, %v294
    %v296 = vrot.slane %v288, %v295
    %v297 = vsel %vm257, %v296, %v292
    %v299 = vsel %vm260, %v297, 0.0
    %300 = vadd.xlane.f32.xlu0 %v299
    %v301 = vpop.xlane.xlu0 %300
    %v302 = vrcp.pop %v301
    %v304 = vlaneseq
    %v305 = vshrl.u32 %v304, 7
    %v306 = vsub.s32 0, %v305
    %v307 = vrot.slane %v302, %v306
    %v308 = vlaneseq
    %v309 = vshrl.u32 %v308, 7
    %v310 = vsub.s32 1, %v309
    %v311 = vrot.slane %v302, %v310
    %v314 = vmul.f32 %v278, %v307
    %v315 = vmul.f32 %v280, %v311
    %v316 = vunpack.c.l.bf16 %v46
    %v317 = vunpack.c.l.bf16 %v47
    %319 = vset.pattern.permute.xlu0 0
    %320 = vperm.xlu0 %319, %v314
    %v321 = vpop.permute.xlu0 %320
    %324 = vset.pattern.permute.xlu0 0
    %325 = vperm.xlu0 %324, %v315
    %v326 = vpop.permute.xlu0 %325
    %v328 = vmul.f32 %v321, %v316
    %v329 = vmul.f32 %v326, %v317
    %v330 = vsel %vm79, %v328, 0.0
    %v331 = vrot.slane %v330, 4
    %v332 = vadd.f32 %v330, %v331
    %v333 = vrot.slane %v332, 2
    %v334 = vadd.f32 %v332, %v333
    %v335 = vrot.slane %v334, 1
    %v336 = vadd.f32 %v334, %v335
    %v337 = vsel %vm79, %v329, 0.0
    %v338 = vrot.slane %v337, 4
    %v339 = vadd.f32 %v337, %v338
    %v340 = vrot.slane %v339, 2
    %v341 = vadd.f32 %v339, %v340
    %v342 = vrot.slane %v341, 1
    %v343 = vadd.f32 %v341, %v342
    %v344 = vpack.c.bf16 %v336, %v336
    %v345 = vpack.c.bf16 %v343, %v343
    %v346 = vld [vmem:[%s5] sm:$0xf]
    %v347 = vld [vmem:[%s5 + $0x4] sm:$0xf]
    %v348 = vld [vmem:[%s5 + $0x8] sm:$0xf]
    %v349 = vld [vmem:[%s5 + $0xc] sm:$0xf]
    %v350 = vld [vmem:[%s5 + $0x10] sm:$0xf]
    %v351 = vld [vmem:[%s5 + $0x14] sm:$0xf]
    %v354 = vunpack.c.l.b16 %v344
    %v355 = vunpack.c.l.b16 %v345
    %v356 = vsel %vm257, %v355, %v354
    %v357 = vpack.c.b16 %v356, %v356
    %v362 = vunpack.c.l.b16 %v348
    %v363 = vunpack.c.l.b16 %v349
    %v364 = vunpack.c.l.b16 %v350
    %v365 = vunpack.c.l.b16 %v351
    %v366 = vpack.c.b16 %v363, %v362
    %v367 = vpack.c.b16 %v365, %v364
    %v371 = vsel %vm79, %v357, 0
    %373 = vmatprep.subr.bf16.mxu0 0
    %374 = vmatpush1.bf16.msra.mxu0 %v366
    %375 = vmatprep.subr.bf16.mxu0 0
    %376 = vmatpush1.bf16.msra.mxu0 %v367
    %377 = vmatprep.subr.bf16.mxu0 0
    %378 = vmatpush1.bf16.msra.mxu0 0
    %379 = vmatprep.subr.bf16.mxu0 0
    %380 = vmatpush1.bf16.msra.mxu0 0
    %381 = vmatprep.subr.bf16.mxu0 0
    %382 = vmatpush1.bf16.msra.mxu0 0
    %383 = vmatprep.subr.bf16.mxu0 0
    %384 = vmatpush1.bf16.msra.mxu0 0
    %385 = vmatprep.subr.bf16.mxu0 0
    %386 = vmatpush1.bf16.msra.mxu0 0
    %387 = vmatprep.subr.bf16.mxu0 0
    %388 = vmatpush1.bf16.msra.mxu0 0
    %389 = vmatprep.subr.bf16.mxu0 0
    %390 = vmatpush1.bf16.msra.mxu0 0
    %391 = vmatprep.subr.bf16.mxu0 0
    %392 = vmatpush1.bf16.msra.mxu0 0
    %393 = vmatprep.subr.bf16.mxu0 0
    %394 = vmatpush1.bf16.msra.mxu0 0
    %395 = vmatprep.subr.bf16.mxu0 0
    %396 = vmatpush1.bf16.msra.mxu0 0
    %397 = vmatprep.subr.bf16.mxu0 0
    %398 = vmatpush1.bf16.msra.mxu0 0
    %399 = vmatprep.subr.bf16.mxu0 0
    %400 = vmatpush1.bf16.msra.mxu0 0
    %401 = vmatprep.subr.bf16.mxu0 0
    %402 = vmatpush1.bf16.msra.mxu0 0
    %403 = vmatprep.subr.bf16.mxu0 0
    %404 = vmatpush1.bf16.msra.mxu0 0
    %405 = vmatprep.mubr.bf16.mxu0 0
    %406 = vmatmul.mubr.bf16.gmra.mrb[0].mxu0 %v371
    %v407 = vpop.f32.mrb[0].mxu0
    %v408 = vadd.f32 0.0, %v407
    %v409 = vpop.f32.mrb[0].mxu0
    %v410 = vpop.f32.mrb[0].mxu0
    %v411 = vpop.f32.mrb[0].mxu0
    %412 = vdwg.mxu0
    %v415 = vunpack.c.l.b16 %v346
    %v416 = vunpack.c.l.b16 %v347
    %v417 = vpack.c.b16 %v416, %v415
    %vm419 = vcmask 130048
    %v421 = vsel %vm419, %v61, 0
    %423 = vmatprep.subr.bf16.mxu0 0
    %424 = vmatpush1.bf16.msra.mxu0 %v417
    %425 = vmatprep.subr.bf16.mxu0 0
    %426 = vmatpush1.bf16.msra.mxu0 0
    %427 = vmatprep.subr.bf16.mxu0 0
    %428 = vmatpush1.bf16.msra.mxu0 0
    %429 = vmatprep.subr.bf16.mxu0 0
    %430 = vmatpush1.bf16.msra.mxu0 0
    %431 = vmatprep.subr.bf16.mxu0 0
    %432 = vmatpush1.bf16.msra.mxu0 0
    %433 = vmatprep.subr.bf16.mxu0 0
    %434 = vmatpush1.bf16.msra.mxu0 0
    %435 = vmatprep.subr.bf16.mxu0 0
    %436 = vmatpush1.bf16.msra.mxu0 0
    %437 = vmatprep.subr.bf16.mxu0 0
    %438 = vmatpush1.bf16.msra.mxu0 0
    %439 = vmatprep.subr.bf16.mxu0 0
    %440 = vmatpush1.bf16.msra.mxu0 0
    %441 = vmatprep.subr.bf16.mxu0 0
    %442 = vmatpush1.bf16.msra.mxu0 0
    %443 = vmatprep.subr.bf16.mxu0 0
    %444 = vmatpush1.bf16.msra.mxu0 0
    %445 = vmatprep.subr.bf16.mxu0 0
    %446 = vmatpush1.bf16.msra.mxu0 0
    %447 = vmatprep.subr.bf16.mxu0 0
    %448 = vmatpush1.bf16.msra.mxu0 0
    %449 = vmatprep.subr.bf16.mxu0 0
    %450 = vmatpush1.bf16.msra.mxu0 0
    %451 = vmatprep.subr.bf16.mxu0 0
    %452 = vmatpush1.bf16.msra.mxu0 0
    %453 = vmatprep.subr.bf16.mxu0 0
    %454 = vmatpush1.bf16.msra.mxu0 0
    %455 = vmatprep.mubr.bf16.mxu0 0
    %456 = vmatmul.mubr.bf16.gmra.mrb[0].mxu0 %v421
    %v457 = vpop.f32.mrb[0].mxu0
    %v458 = vadd.f32 %v408, %v457
    %v459 = vpop.f32.mrb[0].mxu0
    %v460 = vpop.f32.mrb[0].mxu0
    %v461 = vpop.f32.mrb[0].mxu0
    %462 = vdwg.mxu0
    %v463 = vld [vmem:[%s7 + $0x3] sm:$0x1]
    %v464 = vlaneseq
    %v465 = vshrl.u32 %v464, 7
    %v466 = vsub.s32 0, %v465
    %v467 = vrot.slane %v463, %v466
    %v468 = vadd.f32 %v458, %v467
    %v469 = vld [vmem:[%s5 + $0x18] sm:$0xf]
    %v470 = vld [vmem:[%s5 + $0x1c] sm:$0xf]
    %v471 = vld [vmem:[%s5 + $0x20] sm:$0xf]
    %v472 = vld [vmem:[%s5 + $0x24] sm:$0xf]
    %v473 = vld [vmem:[%s7 + $0x6] sm:$0x1]
    %v474 = vlaneseq
    %v475 = vshrl.u32 %v474, 7
    %v476 = vsub.s32 0, %v475
    %v477 = vrot.slane %v473, %v476
    %v482 = vunpack.c.l.b16 %v469
    %v483 = vunpack.c.l.b16 %v470
    %v484 = vunpack.c.l.b16 %v471
    %v485 = vunpack.c.l.b16 %v472
    %v486 = vpack.c.b16 %v483, %v482
    %v487 = vpack.c.b16 %v485, %v484
    %490 = vmatprep.subr.bf16.mxu0 0
    %491 = vmatpush1.bf16.msra.mxu0 %v486
    %492 = vmatprep.subr.bf16.mxu0 0
    %493 = vmatpush1.bf16.msra.mxu0 %v487
    %494 = vmatprep.subr.bf16.mxu0 0
    %495 = vmatpush1.bf16.msra.mxu0 0
    %496 = vmatprep.subr.bf16.mxu0 0
    %497 = vmatpush1.bf16.msra.mxu0 0
    %498 = vmatprep.subr.bf16.mxu0 0
    %499 = vmatpush1.bf16.msra.mxu0 0
    %500 = vmatprep.subr.bf16.mxu0 0
    %501 = vmatpush1.bf16.msra.mxu0 0
    %502 = vmatprep.subr.bf16.mxu0 0
    %503 = vmatpush1.bf16.msra.mxu0 0
    %504 = vmatprep.subr.bf16.mxu0 0
    %505 = vmatpush1.bf16.msra.mxu0 0
    %506 = vmatprep.subr.bf16.mxu0 0
    %507 = vmatpush1.bf16.msra.mxu0 0
    %508 = vmatprep.subr.bf16.mxu0 0
    %509 = vmatpush1.bf16.msra.mxu0 0
    %510 = vmatprep.subr.bf16.mxu0 0
    %511 = vmatpush1.bf16.msra.mxu0 0
    %512 = vmatprep.subr.bf16.mxu0 0
    %513 = vmatpush1.bf16.msra.mxu0 0
    %514 = vmatprep.subr.bf16.mxu0 0
    %515 = vmatpush1.bf16.msra.mxu0 0
    %516 = vmatprep.subr.bf16.mxu0 0
    %517 = vmatpush1.bf16.msra.mxu0 0
    %518 = vmatprep.subr.bf16.mxu0 0
    %519 = vmatpush1.bf16.msra.mxu0 0
    %520 = vmatprep.subr.bf16.mxu0 0
    %521 = vmatpush1.bf16.msra.mxu0 0
    %522 = vmatprep.mubr.bf16.mxu0 0
    %523 = vmatmul.mubr.bf16.gmra.mrb[0].mxu0 %v81
    %v524 = vpop.f32.mrb[0].mxu0
    %v525 = vadd.f32 %v477, %v524
    %v526 = vpop.f32.mrb[0].mxu0
    %v527 = vpop.f32.mrb[0].mxu0
    %v528 = vpop.f32.mrb[0].mxu0
    %529 = vdwg.mxu0
    %v530 = vld [vmem:[%s5 + $0x28] sm:$0xf]
    %v531 = vld [vmem:[%s5 + $0x2c] sm:$0xf]
    %v532 = vld [vmem:[%s5 + $0x30] sm:$0xf]
    %v533 = vld [vmem:[%s5 + $0x34] sm:$0xf]
    %v534 = vld [vmem:[%s5 + $0x38] sm:$0xf]
    %v535 = vld [vmem:[%s5 + $0x3c] sm:$0xf]
    %v540 = vunpack.c.l.b16 %v532
    %v541 = vunpack.c.l.b16 %v533
    %v542 = vunpack.c.l.b16 %v534
    %v543 = vunpack.c.l.b16 %v535
    %v544 = vpack.c.b16 %v541, %v540
    %v545 = vpack.c.b16 %v543, %v542
    %548 = vmatprep.subr.bf16.mxu0 0
    %549 = vmatpush1.bf16.msra.mxu0 %v544
    %550 = vmatprep.subr.bf16.mxu0 0
    %551 = vmatpush1.bf16.msra.mxu0 %v545
    %552 = vmatprep.subr.bf16.mxu0 0
    %553 = vmatpush1.bf16.msra.mxu0 0
    %554 = vmatprep.subr.bf16.mxu0 0
    %555 = vmatpush1.bf16.msra.mxu0 0
    %556 = vmatprep.subr.bf16.mxu0 0
    %557 = vmatpush1.bf16.msra.mxu0 0
    %558 = vmatprep.subr.bf16.mxu0 0
    %559 = vmatpush1.bf16.msra.mxu0 0
    %560 = vmatprep.subr.bf16.mxu0 0
    %561 = vmatpush1.bf16.msra.mxu0 0
    %562 = vmatprep.subr.bf16.mxu0 0
    %563 = vmatpush1.bf16.msra.mxu0 0
    %564 = vmatprep.subr.bf16.mxu0 0
    %565 = vmatpush1.bf16.msra.mxu0 0
    %566 = vmatprep.subr.bf16.mxu0 0
    %567 = vmatpush1.bf16.msra.mxu0 0
    %568 = vmatprep.subr.bf16.mxu0 0
    %569 = vmatpush1.bf16.msra.mxu0 0
    %570 = vmatprep.subr.bf16.mxu0 0
    %571 = vmatpush1.bf16.msra.mxu0 0
    %572 = vmatprep.subr.bf16.mxu0 0
    %573 = vmatpush1.bf16.msra.mxu0 0
    %574 = vmatprep.subr.bf16.mxu0 0
    %575 = vmatpush1.bf16.msra.mxu0 0
    %576 = vmatprep.subr.bf16.mxu0 0
    %577 = vmatpush1.bf16.msra.mxu0 0
    %578 = vmatprep.subr.bf16.mxu0 0
    %579 = vmatpush1.bf16.msra.mxu0 0
    %580 = vmatprep.mubr.bf16.mxu0 0
    %581 = vmatmul.mubr.bf16.gmra.mrb[0].mxu0 %v371
    %v582 = vpop.f32.mrb[0].mxu0
    %v583 = vadd.f32 0.0, %v582
    %v584 = vpop.f32.mrb[0].mxu0
    %v585 = vpop.f32.mrb[0].mxu0
    %v586 = vpop.f32.mrb[0].mxu0
    %587 = vdwg.mxu0
    %v590 = vunpack.c.l.b16 %v530
    %v591 = vunpack.c.l.b16 %v531
    %v592 = vpack.c.b16 %v591, %v590
    %594 = vmatprep.subr.bf16.mxu0 0
    %595 = vmatpush1.bf16.msra.mxu0 %v592
    %596 = vmatprep.subr.bf16.mxu0 0
    %597 = vmatpush1.bf16.msra.mxu0 0
    %598 = vmatprep.subr.bf16.mxu0 0
    %599 = vmatpush1.bf16.msra.mxu0 0
    %600 = vmatprep.subr.bf16.mxu0 0
    %601 = vmatpush1.bf16.msra.mxu0 0
    %602 = vmatprep.subr.bf16.mxu0 0
    %603 = vmatpush1.bf16.msra.mxu0 0
    %604 = vmatprep.subr.bf16.mxu0 0
    %605 = vmatpush1.bf16.msra.mxu0 0
    %606 = vmatprep.subr.bf16.mxu0 0
    %607 = vmatpush1.bf16.msra.mxu0 0
    %608 = vmatprep.subr.bf16.mxu0 0
    %609 = vmatpush1.bf16.msra.mxu0 0
    %610 = vmatprep.subr.bf16.mxu0 0
    %611 = vmatpush1.bf16.msra.mxu0 0
    %612 = vmatprep.subr.bf16.mxu0 0
    %613 = vmatpush1.bf16.msra.mxu0 0
    %614 = vmatprep.subr.bf16.mxu0 0
    %615 = vmatpush1.bf16.msra.mxu0 0
    %616 = vmatprep.subr.bf16.mxu0 0
    %617 = vmatpush1.bf16.msra.mxu0 0
    %618 = vmatprep.subr.bf16.mxu0 0
    %619 = vmatpush1.bf16.msra.mxu0 0
    %620 = vmatprep.subr.bf16.mxu0 0
    %621 = vmatpush1.bf16.msra.mxu0 0
    %622 = vmatprep.subr.bf16.mxu0 0
    %623 = vmatpush1.bf16.msra.mxu0 0
    %624 = vmatprep.subr.bf16.mxu0 0
    %625 = vmatpush1.bf16.msra.mxu0 0
    %626 = vmatprep.mubr.bf16.mxu0 0
    %627 = vmatmul.mubr.bf16.gmra.mrb[0].mxu0 %v421
    %v628 = vpop.f32.mrb[0].mxu0
    %v629 = vadd.f32 %v583, %v628
    %v630 = vpop.f32.mrb[0].mxu0
    %v631 = vpop.f32.mrb[0].mxu0
    %v632 = vpop.f32.mrb[0].mxu0
    %633 = vdwg.mxu0
    %v634 = vld [vmem:[%s7 + $0x4] sm:$0x1]
    %v635 = vlaneseq
    %v636 = vshrl.u32 %v635, 7
    %v637 = vsub.s32 0, %v636
    %v638 = vrot.slane %v634, %v637
    %v639 = vadd.f32 %v629, %v638
    %v640 = vld [vmem:[%s5 + $0x40] sm:$0xf]
    %v641 = vld [vmem:[%s5 + $0x44] sm:$0xf]
    %v642 = vld [vmem:[%s5 + $0x48] sm:$0xf]
    %v643 = vld [vmem:[%s5 + $0x4c] sm:$0xf]
    %v644 = vld [vmem:[%s7 + $0x7] sm:$0x1]
    %v645 = vlaneseq
    %v646 = vshrl.u32 %v645, 7
    %v647 = vsub.s32 0, %v646
    %v648 = vrot.slane %v644, %v647
    %v653 = vunpack.c.l.b16 %v640
    %v654 = vunpack.c.l.b16 %v641
    %v655 = vunpack.c.l.b16 %v642
    %v656 = vunpack.c.l.b16 %v643
    %v657 = vpack.c.b16 %v654, %v653
    %v658 = vpack.c.b16 %v656, %v655
    %661 = vmatprep.subr.bf16.mxu0 0
    %662 = vmatpush1.bf16.msra.mxu0 %v657
    %663 = vmatprep.subr.bf16.mxu0 0
    %664 = vmatpush1.bf16.msra.mxu0 %v658
    %665 = vmatprep.subr.bf16.mxu0 0
    %666 = vmatpush1.bf16.msra.mxu0 0
    %667 = vmatprep.subr.bf16.mxu0 0
    %668 = vmatpush1.bf16.msra.mxu0 0
    %669 = vmatprep.subr.bf16.mxu0 0
    %670 = vmatpush1.bf16.msra.mxu0 0
    %671 = vmatprep.subr.bf16.mxu0 0
    %672 = vmatpush1.bf16.msra.mxu0 0
    %673 = vmatprep.subr.bf16.mxu0 0
    %674 = vmatpush1.bf16.msra.mxu0 0
    %675 = vmatprep.subr.bf16.mxu0 0
    %676 = vmatpush1.bf16.msra.mxu0 0
    %677 = vmatprep.subr.bf16.mxu0 0
    %678 = vmatpush1.bf16.msra.mxu0 0
    %679 = vmatprep.subr.bf16.mxu0 0
    %680 = vmatpush1.bf16.msra.mxu0 0
    %681 = vmatprep.subr.bf16.mxu0 0
    %682 = vmatpush1.bf16.msra.mxu0 0
    %683 = vmatprep.subr.bf16.mxu0 0
    %684 = vmatpush1.bf16.msra.mxu0 0
    %685 = vmatprep.subr.bf16.mxu0 0
    %686 = vmatpush1.bf16.msra.mxu0 0
    %687 = vmatprep.subr.bf16.mxu0 0
    %688 = vmatpush1.bf16.msra.mxu0 0
    %689 = vmatprep.subr.bf16.mxu0 0
    %690 = vmatpush1.bf16.msra.mxu0 0
    %691 = vmatprep.subr.bf16.mxu0 0
    %692 = vmatpush1.bf16.msra.mxu0 0
    %693 = vmatprep.mubr.bf16.mxu0 0
    %694 = vmatmul.mubr.bf16.gmra.mrb[0].mxu0 %v81
    %v695 = vpop.f32.mrb[0].mxu0
    %v696 = vadd.f32 %v648, %v695
    %v697 = vpop.f32.mrb[0].mxu0
    %v698 = vpop.f32.mrb[0].mxu0
    %v699 = vpop.f32.mrb[0].mxu0
    %700 = vdwg.mxu0
    %v701 = vld [vmem:[%s5 + $0x50] sm:$0xf]
    %v702 = vld [vmem:[%s5 + $0x54] sm:$0xf]
    %v703 = vld [vmem:[%s5 + $0x58] sm:$0xf]
    %v704 = vld [vmem:[%s5 + $0x5c] sm:$0xf]
    %v705 = vld [vmem:[%s5 + $0x60] sm:$0xf]
    %v706 = vld [vmem:[%s5 + $0x64] sm:$0xf]
    %v711 = vunpack.c.l.b16 %v703
    %v712 = vunpack.c.l.b16 %v704
    %v713 = vunpack.c.l.b16 %v705
    %v714 = vunpack.c.l.b16 %v706
    %v715 = vpack.c.b16 %v712, %v711
    %v716 = vpack.c.b16 %v714, %v713
    %719 = vmatprep.subr.bf16.mxu0 0
    %720 = vmatpush1.bf16.msra.mxu0 %v715
    %721 = vmatprep.subr.bf16.mxu0 0
    %722 = vmatpush1.bf16.msra.mxu0 %v716
    %723 = vmatprep.subr.bf16.mxu0 0
    %724 = vmatpush1.bf16.msra.mxu0 0
    %725 = vmatprep.subr.bf16.mxu0 0
    %726 = vmatpush1.bf16.msra.mxu0 0
    %727 = vmatprep.subr.bf16.mxu0 0
    %728 = vmatpush1.bf16.msra.mxu0 0
    %729 = vmatprep.subr.bf16.mxu0 0
    %730 = vmatpush1.bf16.msra.mxu0 0
    %731 = vmatprep.subr.bf16.mxu0 0
    %732 = vmatpush1.bf16.msra.mxu0 0
    %733 = vmatprep.subr.bf16.mxu0 0
    %734 = vmatpush1.bf16.msra.mxu0 0
    %735 = vmatprep.subr.bf16.mxu0 0
    %736 = vmatpush1.bf16.msra.mxu0 0
    %737 = vmatprep.subr.bf16.mxu0 0
    %738 = vmatpush1.bf16.msra.mxu0 0
    %739 = vmatprep.subr.bf16.mxu0 0
    %740 = vmatpush1.bf16.msra.mxu0 0
    %741 = vmatprep.subr.bf16.mxu0 0
    %742 = vmatpush1.bf16.msra.mxu0 0
    %743 = vmatprep.subr.bf16.mxu0 0
    %744 = vmatpush1.bf16.msra.mxu0 0
    %745 = vmatprep.subr.bf16.mxu0 0
    %746 = vmatpush1.bf16.msra.mxu0 0
    %747 = vmatprep.subr.bf16.mxu0 0
    %748 = vmatpush1.bf16.msra.mxu0 0
    %749 = vmatprep.subr.bf16.mxu0 0
    %750 = vmatpush1.bf16.msra.mxu0 0
    %751 = vmatprep.mubr.bf16.mxu0 0
    %752 = vmatmul.mubr.bf16.gmra.mrb[0].mxu0 %v371
    %v753 = vpop.f32.mrb[0].mxu0
    %v754 = vadd.f32 0.0, %v753
    %v755 = vpop.f32.mrb[0].mxu0
    %v756 = vpop.f32.mrb[0].mxu0
    %v757 = vpop.f32.mrb[0].mxu0
    %758 = vdwg.mxu0
    %v761 = vunpack.c.l.b16 %v701
    %v762 = vunpack.c.l.b16 %v702
    %v763 = vpack.c.b16 %v762, %v761
    %765 = vmatprep.subr.bf16.mxu0 0
    %766 = vmatpush1.bf16.msra.mxu0 %v763
    %767 = vmatprep.subr.bf16.mxu0 0
    %768 = vmatpush1.bf16.msra.mxu0 0
    %769 = vmatprep.subr.bf16.mxu0 0
    %770 = vmatpush1.bf16.msra.mxu0 0
    %771 = vmatprep.subr.bf16.mxu0 0
    %772 = vmatpush1.bf16.msra.mxu0 0
    %773 = vmatprep.subr.bf16.mxu0 0
    %774 = vmatpush1.bf16.msra.mxu0 0
    %775 = vmatprep.subr.bf16.mxu0 0
    %776 = vmatpush1.bf16.msra.mxu0 0
    %777 = vmatprep.subr.bf16.mxu0 0
    %778 = vmatpush1.bf16.msra.mxu0 0
    %779 = vmatprep.subr.bf16.mxu0 0
    %780 = vmatpush1.bf16.msra.mxu0 0
    %781 = vmatprep.subr.bf16.mxu0 0
    %782 = vmatpush1.bf16.msra.mxu0 0
    %783 = vmatprep.subr.bf16.mxu0 0
    %784 = vmatpush1.bf16.msra.mxu0 0
    %785 = vmatprep.subr.bf16.mxu0 0
    %786 = vmatpush1.bf16.msra.mxu0 0
    %787 = vmatprep.subr.bf16.mxu0 0
    %788 = vmatpush1.bf16.msra.mxu0 0
    %789 = vmatprep.subr.bf16.mxu0 0
    %790 = vmatpush1.bf16.msra.mxu0 0
    %791 = vmatprep.subr.bf16.mxu0 0
    %792 = vmatpush1.bf16.msra.mxu0 0
    %793 = vmatprep.subr.bf16.mxu0 0
    %794 = vmatpush1.bf16.msra.mxu0 0
    %795 = vmatprep.subr.bf16.mxu0 0
    %796 = vmatpush1.bf16.msra.mxu0 0
    %797 = vmatprep.mubr.bf16.mxu0 0
    %798 = vmatmul.mubr.bf16.gmra.mrb[0].mxu0 %v421
    %v799 = vpop.f32.mrb[0].mxu0
    %v800 = vadd.f32 %v754, %v799
    %v801 = vpop.f32.mrb[0].mxu0
    %v802 = vpop.f32.mrb[0].mxu0
    %v803 = vpop.f32.mrb[0].mxu0
    %804 = vdwg.mxu0
    %v805 = vld [vmem:[%s7 + $0x5] sm:$0x1]
    %v806 = vlaneseq
    %v807 = vshrl.u32 %v806, 7
    %v808 = vsub.s32 0, %v807
    %v809 = vrot.slane %v805, %v808
    %v810 = vadd.f32 %v800, %v809
    %v811 = vld [vmem:[%s5 + $0x68] sm:$0xf]
    %v812 = vld [vmem:[%s5 + $0x6c] sm:$0xf]
    %v813 = vld [vmem:[%s5 + $0x70] sm:$0xf]
    %v814 = vld [vmem:[%s5 + $0x74] sm:$0xf]
    %v815 = vld [vmem:[%s7 + $0x8] sm:$0x1]
    %v816 = vlaneseq
    %v817 = vshrl.u32 %v816, 7
    %v818 = vsub.s32 0, %v817
    %v819 = vrot.slane %v815, %v818
    %v824 = vunpack.c.l.b16 %v811
    %v825 = vunpack.c.l.b16 %v812
    %v826 = vunpack.c.l.b16 %v813
    %v827 = vunpack.c.l.b16 %v814
    %v828 = vpack.c.b16 %v825, %v824
    %v829 = vpack.c.b16 %v827, %v826
    %832 = vmatprep.subr.bf16.mxu0 0
    %833 = vmatpush1.bf16.msra.mxu0 %v828
    %834 = vmatprep.subr.bf16.mxu0 0
    %835 = vmatpush1.bf16.msra.mxu0 %v829
    %836 = vmatprep.subr.bf16.mxu0 0
    %837 = vmatpush1.bf16.msra.mxu0 0
    %838 = vmatprep.subr.bf16.mxu0 0
    %839 = vmatpush1.bf16.msra.mxu0 0
    %840 = vmatprep.subr.bf16.mxu0 0
    %841 = vmatpush1.bf16.msra.mxu0 0
    %842 = vmatprep.subr.bf16.mxu0 0
    %843 = vmatpush1.bf16.msra.mxu0 0
    %844 = vmatprep.subr.bf16.mxu0 0
    %845 = vmatpush1.bf16.msra.mxu0 0
    %846 = vmatprep.subr.bf16.mxu0 0
    %847 = vmatpush1.bf16.msra.mxu0 0
    %848 = vmatprep.subr.bf16.mxu0 0
    %849 = vmatpush1.bf16.msra.mxu0 0
    %850 = vmatprep.subr.bf16.mxu0 0
    %851 = vmatpush1.bf16.msra.mxu0 0
    %852 = vmatprep.subr.bf16.mxu0 0
    %853 = vmatpush1.bf16.msra.mxu0 0
    %854 = vmatprep.subr.bf16.mxu0 0
    %855 = vmatpush1.bf16.msra.mxu0 0
    %856 = vmatprep.subr.bf16.mxu0 0
    %857 = vmatpush1.bf16.msra.mxu0 0
    %858 = vmatprep.subr.bf16.mxu0 0
    %859 = vmatpush1.bf16.msra.mxu0 0
    %860 = vmatprep.subr.bf16.mxu0 0
    %861 = vmatpush1.bf16.msra.mxu0 0
    %862 = vmatprep.subr.bf16.mxu0 0
    %863 = vmatpush1.bf16.msra.mxu0 0
    %864 = vmatprep.mubr.bf16.mxu0 0
    %865 = vmatmul.mubr.bf16.gmra.mrb[0].mxu0 %v81
    %v866 = vpop.f32.mrb[0].mxu0
    %v867 = vadd.f32 %v819, %v866
    %v868 = vpop.f32.mrb[0].mxu0
    %v869 = vpop.f32.mrb[0].mxu0
    %v870 = vpop.f32.mrb[0].mxu0
    %871 = vdwg.mxu0
    %v872 = vadd.f32 %v468, %v525
    %v873 = vxor.u32 %v872, 2147483648
    %v874 = vmul.f32 %v873, 1.442695
    %v875 = vpow.pop %v874
    %v876 = vadd.f32 %v875, 1.0
    %v877 = vrcp.pop %v876
    %v878 = vmul.f32 1.0, %v877
    %v879 = vadd.f32 %v639, %v696
    %v880 = vxor.u32 %v879, 2147483648
    %v881 = vmul.f32 %v880, 1.442695
    %v882 = vpow.pop %v881
    %v883 = vadd.f32 %v882, 1.0
    %v884 = vrcp.pop %v883
    %v885 = vmul.f32 1.0, %v884
    %v886 = vmul.f32 %v878, %v867
    %v887 = vadd.f32 %v810, %v886
    %v888 = vtanh.pop %v887
    %v889 = vsub.f32 1.0, %v885
    %v890 = vmul.f32 %v889, %v888
    %v891 = vmul.f32 %v885, %v45
    %v892 = vadd.f32 %v890, %v891
    %v893 = vpack.c.bf16 %v892, %v892
    %v894 = vld [vmem:[%s6] sm:$0xf]
    %v895 = vld [vmem:[%s6 + $0x4] sm:$0xf]
    %v896 = vld [vmem:[%s6 + $0x8] sm:$0xf]
    %v897 = vld [vmem:[%s6 + $0xc] sm:$0xf]
    %v898 = vld [vmem:[%s6 + $0x10] sm:$0xf]
    %v899 = vld [vmem:[%s6 + $0x14] sm:$0xf]
    %v900 = vld [vmem:[%s6 + $0x18] sm:$0xf]
    %v901 = vld [vmem:[%s6 + $0x1c] sm:$0xf]
    %v906 = vunpack.c.l.b16 %v898
    %v907 = vunpack.c.l.b16 %v899
    %v908 = vunpack.c.l.b16 %v900
    %v909 = vunpack.c.l.b16 %v901
    %v910 = vpack.c.b16 %v907, %v906
    %v911 = vpack.c.b16 %v909, %v908
    %914 = vmatprep.subr.bf16.mxu0 0
    %915 = vmatpush1.bf16.msra.mxu0 %v910
    %916 = vmatprep.subr.bf16.mxu0 0
    %917 = vmatpush1.bf16.msra.mxu0 %v911
    %918 = vmatprep.subr.bf16.mxu0 0
    %919 = vmatpush1.bf16.msra.mxu0 0
    %920 = vmatprep.subr.bf16.mxu0 0
    %921 = vmatpush1.bf16.msra.mxu0 0
    %922 = vmatprep.subr.bf16.mxu0 0
    %923 = vmatpush1.bf16.msra.mxu0 0
    %924 = vmatprep.subr.bf16.mxu0 0
    %925 = vmatpush1.bf16.msra.mxu0 0
    %926 = vmatprep.subr.bf16.mxu0 0
    %927 = vmatpush1.bf16.msra.mxu0 0
    %928 = vmatprep.subr.bf16.mxu0 0
    %929 = vmatpush1.bf16.msra.mxu0 0
    %930 = vmatprep.subr.bf16.mxu0 0
    %931 = vmatpush1.bf16.msra.mxu0 0
    %932 = vmatprep.subr.bf16.mxu0 0
    %933 = vmatpush1.bf16.msra.mxu0 0
    %934 = vmatprep.subr.bf16.mxu0 0
    %935 = vmatpush1.bf16.msra.mxu0 0
    %936 = vmatprep.subr.bf16.mxu0 0
    %937 = vmatpush1.bf16.msra.mxu0 0
    %938 = vmatprep.subr.bf16.mxu0 0
    %939 = vmatpush1.bf16.msra.mxu0 0
    %940 = vmatprep.subr.bf16.mxu0 0
    %941 = vmatpush1.bf16.msra.mxu0 0
    %942 = vmatprep.subr.bf16.mxu0 0
    %943 = vmatpush1.bf16.msra.mxu0 0
    %944 = vmatprep.subr.bf16.mxu0 0
    %945 = vmatpush1.bf16.msra.mxu0 0
    %946 = vmatprep.mubr.bf16.mxu0 0
    %947 = vmatmul.mubr.bf16.gmra.mrb[0].mxu0 %v371
    %v948 = vpop.f32.mrb[0].mxu0
    %v949 = vadd.f32 0.0, %v948
    %v950 = vpop.f32.mrb[0].mxu0
    %v951 = vpop.f32.mrb[0].mxu0
    %v952 = vpop.f32.mrb[0].mxu0
    %953 = vdwg.mxu0
    %v958 = vunpack.c.l.b16 %v894
    %v959 = vunpack.c.l.b16 %v895
    %v960 = vunpack.c.l.b16 %v896
    %v961 = vunpack.c.l.b16 %v897
    %v962 = vpack.c.b16 %v959, %v958
    %v963 = vpack.c.b16 %v961, %v960
    %v967 = vsel %vm79, %v893, 0
    %969 = vmatprep.subr.bf16.mxu0 0
    %970 = vmatpush1.bf16.msra.mxu0 %v962
    %971 = vmatprep.subr.bf16.mxu0 0
    %972 = vmatpush1.bf16.msra.mxu0 %v963
    %973 = vmatprep.subr.bf16.mxu0 0
    %974 = vmatpush1.bf16.msra.mxu0 0
    %975 = vmatprep.subr.bf16.mxu0 0
    %976 = vmatpush1.bf16.msra.mxu0 0
    %977 = vmatprep.subr.bf16.mxu0 0
    %978 = vmatpush1.bf16.msra.mxu0 0
    %979 = vmatprep.subr.bf16.mxu0 0
    %980 = vmatpush1.bf16.msra.mxu0 0
    %981 = vmatprep.subr.bf16.mxu0 0
    %982 = vmatpush1.bf16.msra.mxu0 0
    %983 = vmatprep.subr.bf16.mxu0 0
    %984 = vmatpush1.bf16.msra.mxu0 0
    %985 = vmatprep.subr.bf16.mxu0 0
    %986 = vmatpush1.bf16.msra.mxu0 0
    %987 = vmatprep.subr.bf16.mxu0 0
    %988 = vmatpush1.bf16.msra.mxu0 0
    %989 = vmatprep.subr.bf16.mxu0 0
    %990 = vmatpush1.bf16.msra.mxu0 0
    %991 = vmatprep.subr.bf16.mxu0 0
    %992 = vmatpush1.bf16.msra.mxu0 0
    %993 = vmatprep.subr.bf16.mxu0 0
    %994 = vmatpush1.bf16.msra.mxu0 0
    %995 = vmatprep.subr.bf16.mxu0 0
    %996 = vmatpush1.bf16.msra.mxu0 0
    %997 = vmatprep.subr.bf16.mxu0 0
    %998 = vmatpush1.bf16.msra.mxu0 0
    %999 = vmatprep.subr.bf16.mxu0 0
    %1000 = vmatpush1.bf16.msra.mxu0 0
    %1001 = vmatprep.mubr.bf16.mxu0 0
    %1002 = vmatmul.mubr.bf16.gmra.mrb[0].mxu0 %v967
    %v1003 = vpop.f32.mrb[0].mxu0
    %v1004 = vadd.f32 %v949, %v1003
    %v1005 = vpop.f32.mrb[0].mxu0
    %v1006 = vpop.f32.mrb[0].mxu0
    %v1007 = vpop.f32.mrb[0].mxu0
    %1008 = vdwg.mxu0
    %v1009 = vld [vmem:[%s6 + $0x20] sm:$0xf]
    %v1010 = vld [vmem:[%s6 + $0x24] sm:$0xf]
    %v1013 = vunpack.c.l.b16 %v1009
    %v1014 = vunpack.c.l.b16 %v1010
    %v1015 = vpack.c.b16 %v1014, %v1013
    %1017 = vmatprep.subr.bf16.mxu0 0
    %1018 = vmatpush1.bf16.msra.mxu0 %v1015
    %1019 = vmatprep.subr.bf16.mxu0 0
    %1020 = vmatpush1.bf16.msra.mxu0 0
    %1021 = vmatprep.subr.bf16.mxu0 0
    %1022 = vmatpush1.bf16.msra.mxu0 0
    %1023 = vmatprep.subr.bf16.mxu0 0
    %1024 = vmatpush1.bf16.msra.mxu0 0
    %1025 = vmatprep.subr.bf16.mxu0 0
    %1026 = vmatpush1.bf16.msra.mxu0 0
    %1027 = vmatprep.subr.bf16.mxu0 0
    %1028 = vmatpush1.bf16.msra.mxu0 0
    %1029 = vmatprep.subr.bf16.mxu0 0
    %1030 = vmatpush1.bf16.msra.mxu0 0
    %1031 = vmatprep.subr.bf16.mxu0 0
    %1032 = vmatpush1.bf16.msra.mxu0 0
    %1033 = vmatprep.subr.bf16.mxu0 0
    %1034 = vmatpush1.bf16.msra.mxu0 0
    %1035 = vmatprep.subr.bf16.mxu0 0
    %1036 = vmatpush1.bf16.msra.mxu0 0
    %1037 = vmatprep.subr.bf16.mxu0 0
    %1038 = vmatpush1.bf16.msra.mxu0 0
    %1039 = vmatprep.subr.bf16.mxu0 0
    %1040 = vmatpush1.bf16.msra.mxu0 0
    %1041 = vmatprep.subr.bf16.mxu0 0
    %1042 = vmatpush1.bf16.msra.mxu0 0
    %1043 = vmatprep.subr.bf16.mxu0 0
    %1044 = vmatpush1.bf16.msra.mxu0 0
    %1045 = vmatprep.subr.bf16.mxu0 0
    %1046 = vmatpush1.bf16.msra.mxu0 0
    %1047 = vmatprep.subr.bf16.mxu0 0
    %1048 = vmatpush1.bf16.msra.mxu0 0
    %1049 = vmatprep.mubr.bf16.mxu0 0
    %1050 = vmatmul.mubr.bf16.gmra.mrb[0].mxu0 %v421
    %v1051 = vpop.f32.mrb[0].mxu0
    %v1052 = vadd.f32 0.0, %v1051
    %v1053 = vpop.f32.mrb[0].mxu0
    %v1054 = vpop.f32.mrb[0].mxu0
    %v1055 = vpop.f32.mrb[0].mxu0
    %1056 = vdwg.mxu0
    %v1057 = vadd.f32 %v1004, %v1052
    %v1058 = vld [vmem:[%s7 + $0x2] sm:$0x1]
    %v1059 = vlaneseq
    %v1060 = vshrl.u32 %v1059, 7
    %v1061 = vsub.s32 0, %v1060
    %v1062 = vrot.slane %v1058, %v1061
    %v1063 = vadd.f32 %v1057, %v1062
    %1064 = vst [vmem:[#allocation5] sm:$0x3] %v1063
    %vm1065 = vcmask 254976
    %1066 = vst.msk [vmem:[#allocation2] sm:$0x3] %vm1065, %v892
    // Predicated region
    $region34: #{tpu_custom_call.1} parent=1 // pred_check
      %p1067 = pneg %p38
    $region35: #{tpu_custom_call.1} parent=1 // pred_check_branch
      %1069 = sbr.rel (%p1067) target = $region37
    $region36: #{tpu_custom_call.1} parent=1 // pred_region
      %1070 = vst.msk [vmem:[#allocation7] sm:$0x3] %vm1065, %v892
    $region37: #{tpu_custom_call.1} parent=1 // pred_fallthru
      _
    // Predicated region
    $region38: #{tpu_custom_call.1} parent=1 // pred_check
      _
    $region39: #{tpu_custom_call.1} parent=1 // pred_check_branch
      %1072 = sbr.rel (0) target = $region41
    $region40: #{tpu_custom_call.1} parent=1 // pred_region
      %s1074 = ssub.s32 32, 32
      %1075 = vsyncadd [#allocation6], %s1074
      %s1077 = sshll.u32 [#allocation5], 4
      %s1078 = int_to_ptr.vmem [resolvable:$true] %s1077
      %1080 = dma.vmem_to_hbm [thread:$0]  %s1078, 32, %s8, [#allocation6]
    $region41: #{tpu_custom_call.1} parent=1 // pred_fallthru
      _
    // Predicated region
    $region42: #{tpu_custom_call.1} parent=1 // pred_check
      _
    $region43: #{tpu_custom_call.1} parent=1 // pred_check_branch
      %1082 = sbr.rel (0) target = $region45
    $region44: #{tpu_custom_call.1} parent=1 // pred_region
      %s1084 = ssub.s32 32, 32
      %1085 = vsyncadd [#allocation8], %s1084
      %s1087 = sshll.u32 [#allocation7], 4
      %s1088 = int_to_ptr.vmem [resolvable:$true] %s1087
      %1090 = dma.vmem_to_hbm [thread:$0]  %s1088, 32, %s9, [#allocation8]
    $region45: #{tpu_custom_call.1} parent=1 // pred_fallthru
      _
    // Predicated region
    $region46: #{tpu_custom_call.1} parent=1 // pred_check
      _
    $region47: #{tpu_custom_call.1} parent=1 // pred_check_branch
      %1092 = sbr.rel (0) target = $region49
    $region48: #{tpu_custom_call.1} parent=1 // pred_region
      %1093 = dma.done [#allocation6], 32
    $region49: #{tpu_custom_call.1} parent=1 // pred_fallthru
      _
    // Predicated region
    $region50: #{tpu_custom_call.1} parent=1 // pred_check
      _
    $region51: #{tpu_custom_call.1} parent=1 // pred_check_branch
      %1095 = sbr.rel (0) target = $region53
    $region52: #{tpu_custom_call.1} parent=1 // pred_region
      %1096 = dma.done [#allocation8], 32
    $region53: #{tpu_custom_call.1} parent=1 // pred_fallthru
      _
    %1097 = vsyncpa [#allocation6], 1
    %1098 = vsyncpa [#allocation8], 1

</llo_original>
